<compile_context>
chip_gen: v6e
topology: v6e:2x2x1
jax: 0.10.0
libtpu: 0.0.40
codegen_flags: <defaults>
</compile_context>

<pallas_src>
import functools

import jax
import jax.numpy as jnp
from jax.experimental import pallas as pl
from jax.experimental.pallas import tpu as pltpu

DIMS = [64, 128, 1024]
IN_DIM = 3


def shared_mlp_kernel(x_ref, w1_ref, b1_ref, w2_ref, b2_ref, w3_ref, b3_ref, o_ref):
    # x_ref: (tm, 3) f32;  w1: (3, 64) f32;  w2: (64, 128);  w3: (128, 1024)
    # w2/w3 arrive already cast to the compute dtype (bf16 by default).
    # biases are (1, dim) f32 and broadcast exactly like nn.Linear's bias.
    x = x_ref[...]
    w1 = w1_ref[...]

    # ---- Layer 1: Linear(3, 64) + ReLU on the VPU (K=3 would waste the MXU) ----
    h = b1_ref[...] + x[:, 0:1] * w1[0:1, :]
    h = h + x[:, 1:2] * w1[1:2, :]
    h = h + x[:, 2:3] * w1[2:3, :]
    h = jnp.maximum(h, 0.0)

    # ---- Layer 2: Linear(64, 128) + ReLU on the MXU, f32 accumulation ----
    h = jnp.dot(h.astype(w2_ref.dtype), w2_ref[...],
                preferred_element_type=jnp.float32)
    h = jnp.maximum(h + b2_ref[...], 0.0)

    # ---- Layer 3: Linear(128, 1024) on the MXU, f32 accumulation ----
    h = jnp.dot(h.astype(w3_ref.dtype), w3_ref[...],
                preferred_element_type=jnp.float32)
    h = h + b3_ref[...]

    o_ref[...] = h.astype(o_ref.dtype)


def _pick_row_tile(M: int, tm: int) -> int:
    """Row tile: <= M, sublane-aligned, and >=2 grid steps for large M (v7x 2 TCs)."""
    tm = max(1, min(tm, M))
    if M >= 512 and pl.cdiv(M, tm) < 2:
        tm = pl.cdiv(M, 2)
    if tm % 8 != 0:
        tm = (tm // 8) * 8 if tm >= 8 else M  # tiny M: single full-array block
    return tm


@functools.partial(jax.jit, static_argnames=("tm", "compute_dtype", "out_dtype"))
def shared_mlp(x, params, *, tm=512, compute_dtype=jnp.bfloat16, out_dtype=None):
    """x: (B, N, 3) -> (B, N, 1024).

    compute_dtype: dtype of the layer-2/3 MXU operands (accumulation is f32).
    out_dtype:     output dtype (None -> same as x; bf16 halves the HBM writeback).
    """
    w1, b1, w2, b2, w3, b3 = params
    B, N, C = x.shape
    assert C == IN_DIM
    M = B * N
    out_dim = DIMS[-1]
    out_dtype = x.dtype if out_dtype is None else out_dtype

    x2 = x.reshape(M, C)
    # Cast the big matmul weights once in the wrapper (tiny arrays), so the
    # kernel's MXU operands are already in the compute dtype.
    w2c = w2.astype(compute_dtype)
    w3c = w3.astype(compute_dtype)

    tm_eff = _pick_row_tile(M, tm)
    grid = (pl.cdiv(M, tm_eff),)  # no padding: Pallas clamps the partial last block

    out = pl.pallas_call(
        shared_mlp_kernel,
        out_shape=jax.ShapeDtypeStruct((M, out_dim), out_dtype),
        grid_spec=pltpu.PrefetchScalarGridSpec(
            num_scalar_prefetch=0,
            grid=grid,
            in_specs=[
                pl.BlockSpec((tm_eff, C), lambda i: (i, 0)),          # x row tile
                pl.BlockSpec((C, DIMS[0]), lambda i: (0, 0)),         # w1 (resident)
                pl.BlockSpec((1, DIMS[0]), lambda i: (0, 0)),         # b1
                pl.BlockSpec((DIMS[0], DIMS[1]), lambda i: (0, 0)),   # w2
                pl.BlockSpec((1, DIMS[1]), lambda i: (0, 0)),         # b2
                pl.BlockSpec((DIMS[1], DIMS[2]), lambda i: (0, 0)),   # w3
                pl.BlockSpec((1, DIMS[2]), lambda i: (0, 0)),         # b3
            ],
            out_specs=pl.BlockSpec((tm_eff, out_dim), lambda i: (i, 0)),
        ),
        compiler_params=pltpu.CompilerParams(
            dimension_semantics=("parallel",),
            vmem_limit_bytes=32 * 1024 * 1024,
        ),
    )(x2, w1, b1, w2c, b2, w3c, b3)

    return out.reshape(B, N, out_dim)


def init_params(key):
    """Deterministic init mimicking nn.Linear default (U(-1/sqrt(fan_in), +))."""
    params = []
    in_dim = IN_DIM
    ks = jax.random.split(key, 2 * len(DIMS))
    for li, out_dim in enumerate(DIMS):
        bound = 1.0 / jnp.sqrt(jnp.float32(in_dim))
        w = jax.random.uniform(ks[2 * li], (in_dim, out_dim),
                               minval=-bound, maxval=bound, dtype=jnp.float32)
        b = jax.random.uniform(ks[2 * li + 1], (1, out_dim),
                               minval=-bound, maxval=bound, dtype=jnp.float32)
        params += [w, b]
        in_dim = out_dim
    return tuple(params)


def reference_mlp(x, params, compute_dtype=jnp.float32):
    """Pure-JAX reference.  Layer 1 is written as broadcast-FMAs (mathematically
    identical to x @ w1 + b1) to mirror the kernel's exact-f32 layer-1 path."""
    w1, b1, w2, b2, w3, b3 = params
    B, N, C = x.shape
    h = x.reshape(-1, C)
    h = b1 + h[:, 0:1] * w1[0:1, :] + h[:, 1:2] * w1[1:2, :] + h[:, 2:3] * w1[2:3, :]
    h = jnp.maximum(h, 0.0)
    h = jnp.dot(h.astype(compute_dtype), w2.astype(compute_dtype),
                preferred_element_type=jnp.float32)
    h = jnp.maximum(h + b2, 0.0)
    h = jnp.dot(h.astype(compute_dtype), w3.astype(compute_dtype),
                preferred_element_type=jnp.float32) + b3
    return h.reshape(B, N, -1)


if __name__ == "__main__":
    key = jax.random.PRNGKey(0)
    k_x, k_p = jax.random.split(key)

    # Small shapes consistent with the module's forward: (batch, num_points, 3).
    batch, num_points = 2, 100
    x = jax.random.normal(k_x, (batch, num_points, IN_DIM), dtype=jnp.float32)
    params = init_params(k_p)
    ref_f32 = reference_mlp(x, params)

    # 1) Exact f32 path: proves the fused kernel matches the reference tightly.
    out_f32 = jax.block_until_ready(
        shared_mlp(x, params, compute_dtype=jnp.float32, out_dtype=jnp.float32))
    assert out_f32.shape == (batch, num_points, DIMS[-1])
    assert jnp.allclose(out_f32, ref_f32, atol=1e-4, rtol=1e-4)

    # 2) Same f32 path with a small tile that does NOT divide M=200: exercises
    #    the no-pad / clamped partial-last-block path.
    out_part = jax.block_until_ready(
        shared_mlp(x, params, tm=64, compute_dtype=jnp.float32, out_dtype=jnp.float32))
    assert jnp.allclose(out_part, ref_f32, atol=1e-4, rtol=1e-4)

    # 3) Default fast path: bf16 MXU operands, f32 accumulation, f32 output.
    out_fast = jax.block_until_ready(shared_mlp(x, params))
    ref_bf16 = reference_mlp(x, params, compute_dtype=jnp.bfloat16)
    assert jnp.allclose(out_fast, ref_bf16, atol=2e-2, rtol=2e-2)

    # 4) bf16-output variant (halves the dominant (M, 1024) HBM writeback).
    out_bf16 = jax.block_until_ready(
        shared_mlp(x, params, out_dtype=jnp.bfloat16))
    assert out_bf16.dtype == jnp.bfloat16
    assert jnp.allclose(out_bf16.astype(jnp.float32), ref_bf16, atol=5e-2, rtol=5e-2)

    print("KERNEL_OK")
</pallas_src>

<mosaic_0001>
module attributes {stable_mosaic.version = 11 : i64} {
  func.func @shared_mlp_kernel(%arg0: i32, %arg1: memref<200x3xf32, #tpu.memory_space<vmem>>, %arg2: memref<3x64xf32, #tpu.memory_space<vmem>>, %arg3: memref<1x64xf32, #tpu.memory_space<vmem>>, %arg4: memref<64x128xf32, #tpu.memory_space<vmem>>, %arg5: memref<1x128xf32, #tpu.memory_space<vmem>>, %arg6: memref<128x1024xf32, #tpu.memory_space<vmem>>, %arg7: memref<1x1024xf32, #tpu.memory_space<vmem>>, %arg8: memref<200x1024xf32, #tpu.memory_space<vmem>>) attributes {dimension_semantics = [#tpu.dimension_semantics<parallel>], iteration_bounds = array<i64: 1>, scalar_prefetch = 0 : i64, scratch_operands = 0 : i64, tpu.core_type = #tpu.core_type<tc>, window_params = [{transform_indices = @transform_0, window_bounds = array<i64: 200, 3>}, {pipeline_mode = #tpu.pipeline_mode<synchronous>, transform_indices = @transform_1, window_bounds = array<i64: 3, 64>}, {pipeline_mode = #tpu.pipeline_mode<synchronous>, transform_indices = @transform_2, window_bounds = array<i64: 1, 64>}, {pipeline_mode = #tpu.pipeline_mode<synchronous>, transform_indices = @transform_3, window_bounds = array<i64: 64, 128>}, {pipeline_mode = #tpu.pipeline_mode<synchronous>, transform_indices = @transform_4, window_bounds = array<i64: 1, 128>}, {pipeline_mode = #tpu.pipeline_mode<synchronous>, transform_indices = @transform_5, window_bounds = array<i64: 128, 1024>}, {pipeline_mode = #tpu.pipeline_mode<synchronous>, transform_indices = @transform_6, window_bounds = array<i64: 1, 1024>}, {transform_indices = @transform_7, window_bounds = array<i64: 200, 1024>}]} {
    %c0 = arith.constant 0 : index
    %c0_0 = arith.constant 0 : index
    %0 = vector.load %arg1[%c0, %c0_0] : memref<200x3xf32, #tpu.memory_space<vmem>>, vector<200x3xf32>
    %c0_1 = arith.constant 0 : index
    %c0_2 = arith.constant 0 : index
    %1 = vector.load %arg2[%c0_1, %c0_2] : memref<3x64xf32, #tpu.memory_space<vmem>>, vector<3x64xf32>
    %c0_3 = arith.constant 0 : index
    %c0_4 = arith.constant 0 : index
    %2 = vector.load %arg3[%c0_3, %c0_4] : memref<1x64xf32, #tpu.memory_space<vmem>>, vector<1x64xf32>
    %3 = vector.extract_strided_slice %0 {offsets = [0, 0], sizes = [200, 1], strides = [1, 1]} : vector<200x3xf32> to vector<200x1xf32>
    %4 = vector.extract_strided_slice %1 {offsets = [0, 0], sizes = [1, 64], strides = [1, 1]} : vector<3x64xf32> to vector<1x64xf32>
    %5 = vector.broadcast %3 : vector<200x1xf32> to vector<200x64xf32>
    %6 = vector.broadcast %4 : vector<1x64xf32> to vector<200x64xf32>
    %7 = arith.mulf %5, %6 : vector<200x64xf32>
    %8 = vector.broadcast %2 : vector<1x64xf32> to vector<200x64xf32>
    %9 = arith.addf %8, %7 : vector<200x64xf32>
    %10 = vector.extract_strided_slice %0 {offsets = [0, 1], sizes = [200, 1], strides = [1, 1]} : vector<200x3xf32> to vector<200x1xf32>
    %11 = vector.extract_strided_slice %1 {offsets = [1, 0], sizes = [1, 64], strides = [1, 1]} : vector<3x64xf32> to vector<1x64xf32>
    %12 = vector.broadcast %10 : vector<200x1xf32> to vector<200x64xf32>
    %13 = vector.broadcast %11 : vector<1x64xf32> to vector<200x64xf32>
    %14 = arith.mulf %12, %13 : vector<200x64xf32>
    %15 = arith.addf %9, %14 : vector<200x64xf32>
    %16 = vector.extract_strided_slice %0 {offsets = [0, 2], sizes = [200, 1], strides = [1, 1]} : vector<200x3xf32> to vector<200x1xf32>
    %17 = vector.extract_strided_slice %1 {offsets = [2, 0], sizes = [1, 64], strides = [1, 1]} : vector<3x64xf32> to vector<1x64xf32>
    %18 = vector.broadcast %16 : vector<200x1xf32> to vector<200x64xf32>
    %19 = vector.broadcast %17 : vector<1x64xf32> to vector<200x64xf32>
    %20 = arith.mulf %18, %19 : vector<200x64xf32>
    %21 = arith.addf %15, %20 : vector<200x64xf32>
    %cst = arith.constant 0.000000e+00 : f32
    %22 = vector.broadcast %cst : f32 to vector<200x64xf32>
    %23 = arith.maximumf %21, %22 : vector<200x64xf32>
    %c0_5 = arith.constant 0 : index
    %c0_6 = arith.constant 0 : index
    %24 = vector.load %arg4[%c0_5, %c0_6] : memref<64x128xf32, #tpu.memory_space<vmem>>, vector<64x128xf32>
    %cst_7 = arith.constant dense<0.000000e+00> : vector<200x128xf32>
    %25 = tpu.matmul %23, %24, %cst_7 {dimension_numbers = #tpu.dot_dimension_numbers<[1], [0], [0], [1], [0, 0, 1, 1], [], []>} : vector<200x64xf32>, vector<64x128xf32>, vector<200x128xf32> -> vector<200x128xf32>
    %c0_8 = arith.constant 0 : index
    %c0_9 = arith.constant 0 : index
    %26 = vector.load %arg5[%c0_8, %c0_9] : memref<1x128xf32, #tpu.memory_space<vmem>>, vector<1x128xf32>
    %27 = vector.broadcast %26 : vector<1x128xf32> to vector<200x128xf32>
    %28 = arith.addf %25, %27 : vector<200x128xf32>
    %cst_10 = arith.constant 0.000000e+00 : f32
    %29 = vector.broadcast %cst_10 : f32 to vector<200x128xf32>
    %30 = arith.maximumf %28, %29 : vector<200x128xf32>
    %c0_11 = arith.constant 0 : index
    %c0_12 = arith.constant 0 : index
    %31 = vector.load %arg6[%c0_11, %c0_12] : memref<128x1024xf32, #tpu.memory_space<vmem>>, vector<128x1024xf32>
    %cst_13 = arith.constant dense<0.000000e+00> : vector<200x1024xf32>
    %32 = tpu.matmul %30, %31, %cst_13 {dimension_numbers = #tpu.dot_dimension_numbers<[1], [0], [0], [1], [0, 0, 1, 1], [], []>} : vector<200x128xf32>, vector<128x1024xf32>, vector<200x1024xf32> -> vector<200x1024xf32>
    %c0_14 = arith.constant 0 : index
    %c0_15 = arith.constant 0 : index
    %33 = vector.load %arg7[%c0_14, %c0_15] : memref<1x1024xf32, #tpu.memory_space<vmem>>, vector<1x1024xf32>
    %34 = vector.broadcast %33 : vector<1x1024xf32> to vector<200x1024xf32>
    %35 = arith.addf %32, %34 : vector<200x1024xf32>
    %c0_16 = arith.constant 0 : index
    %c0_17 = arith.constant 0 : index
    %36 = vector.load %arg8[%c0_16, %c0_17] : memref<200x1024xf32, #tpu.memory_space<vmem>>, vector<200x1024xf32>
    tpu.vector_store %arg8[%c0_16, %c0_17], %35 {strides = array<i32>} : memref<200x1024xf32, #tpu.memory_space<vmem>>, vector<200x1024xf32>,
    return
  }
  func.func @transform_0(%arg0: i32) -> (i32, i32) {
    %c0_i32 = arith.constant 0 : i32
    %c0_i32_0 = arith.constant 0 : i32
    return %arg0, %c0_i32 : i32, i32
  }
  func.func @transform_1(%arg0: i32) -> (i32, i32) {
    %c0_i32 = arith.constant 0 : i32
    %c0_i32_0 = arith.constant 0 : i32
    %c0_i32_1 = arith.constant 0 : i32
    return %c0_i32, %c0_i32_0 : i32, i32
  }
  func.func @transform_2(%arg0: i32) -> (i32, i32) {
    %c0_i32 = arith.constant 0 : i32
    %c0_i32_0 = arith.constant 0 : i32
    %c0_i32_1 = arith.constant 0 : i32
    return %c0_i32, %c0_i32_0 : i32, i32
  }
  func.func @transform_3(%arg0: i32) -> (i32, i32) {
    %c0_i32 = arith.constant 0 : i32
    %c0_i32_0 = arith.constant 0 : i32
    %c0_i32_1 = arith.constant 0 : i32
    return %c0_i32, %c0_i32_0 : i32, i32
  }
  func.func @transform_4(%arg0: i32) -> (i32, i32) {
    %c0_i32 = arith.constant 0 : i32
    %c0_i32_0 = arith.constant 0 : i32
    %c0_i32_1 = arith.constant 0 : i32
    return %c0_i32, %c0_i32_0 : i32, i32
  }
  func.func @transform_5(%arg0: i32) -> (i32, i32) {
    %c0_i32 = arith.constant 0 : i32
    %c0_i32_0 = arith.constant 0 : i32
    %c0_i32_1 = arith.constant 0 : i32
    return %c0_i32, %c0_i32_0 : i32, i32
  }
  func.func @transform_6(%arg0: i32) -> (i32, i32) {
    %c0_i32 = arith.constant 0 : i32
    %c0_i32_0 = arith.constant 0 : i32
    %c0_i32_1 = arith.constant 0 : i32
    return %c0_i32, %c0_i32_0 : i32, i32
  }
  func.func @transform_7(%arg0: i32) -> (i32, i32) {
    %c0_i32 = arith.constant 0 : i32
    %c0_i32_0 = arith.constant 0 : i32
    return %arg0, %c0_i32 : i32, i32
  }
}

</mosaic_0001>

<llo_original>
// kernel: shared_mlp.1
$region0: #{shared_mlp.1}
  #allocation0 [shape = 'u32[]', space=smem, size = 0x4, offset = 0x4, fixed_abs, tag = 'smem constant byte address 0x4 - core index']
  #allocation1 [shape = 'u32[144,128]{1,0:T(1,128)}', space=vmem, size = 0x12000, scoped, tag = 'internal scratch']
  %s0 = inlined_call_operand.vmem [shape: f32[200,3], index: 0, kind: input, shape index: {}]
  %s1 = inlined_call_operand.vmem [shape: f32[3,64], index: 1, kind: input, shape index: {}]
  %s2 = inlined_call_operand.vmem [shape: f32[1,64], index: 2, kind: input, shape index: {}]
  %s3 = inlined_call_operand.vmem [shape: f32[64,128], index: 3, kind: input, shape index: {}]
  %s4 = inlined_call_operand.vmem [shape: f32[1,128], index: 4, kind: input, shape index: {}]
  %s5 = inlined_call_operand.hbm [shape: f32[128,1024], index: 5, kind: input, shape index: {}]
  %s6 = inlined_call_operand.vmem [shape: f32[1,1024], index: 6, kind: input, shape index: {}]
  %s7 = inlined_call_operand.vmem [shape: f32[200,1024], index: 7, kind: output, shape index: {}]
  %s8 = sld [smem:[#allocation0]]
  $region42: #{shared_mlp.1} parent=0
    _
  %s10 = ssub.s32 1, %s8
  %s11 = scalar_select 0, %s10, %s8
  $region1: #{shared_mlp.1} parent=0
    #allocation2 [shape = 'u8[524288]{0}', space=vmem, size = 0x80000, scoped, tag = 'input window, operand 5, single buffered']
    #allocation3 [shape = 's32[1]{0}', space=sflag, size = 0x4, scoped, tag = 'scoped memory for shared_mlp.1']
    %12 = vsyncpa [#allocation3], 0
    // Predicated region
    $region2: #{shared_mlp.1} parent=1 // pred_check
      _
    $region3: #{shared_mlp.1} parent=1 // pred_check_branch
      %14 = sbr.rel (0) target = $region5
    $region4: #{shared_mlp.1} parent=1 // pred_region
      _
    $region5: #{shared_mlp.1} parent=1 // pred_fallthru
      _
    // Predicated region
    $region6: #{shared_mlp.1} parent=1 // pred_check
      _
    $region7: #{shared_mlp.1} parent=1 // pred_check_branch
      %16 = sbr.rel (0) target = $region9
    $region8: #{shared_mlp.1} parent=1 // pred_region
      _
    $region9: #{shared_mlp.1} parent=1 // pred_fallthru
      _
    // Predicated region
    $region10: #{shared_mlp.1} parent=1 // pred_check
      _
    $region11: #{shared_mlp.1} parent=1 // pred_check_branch
      %18 = sbr.rel (0) target = $region13
    $region12: #{shared_mlp.1} parent=1 // pred_region
      _
    $region13: #{shared_mlp.1} parent=1 // pred_fallthru
      _
    // Predicated region
    $region14: #{shared_mlp.1} parent=1 // pred_check
      _
    $region15: #{shared_mlp.1} parent=1 // pred_check_branch
      %20 = sbr.rel (0) target = $region17
    $region16: #{shared_mlp.1} parent=1 // pred_region
      _
    $region17: #{shared_mlp.1} parent=1 // pred_fallthru
      _
    // Predicated region
    $region18: #{shared_mlp.1} parent=1 // pred_check
      _
    $region19: #{shared_mlp.1} parent=1 // pred_check_branch
      %22 = sbr.rel (0) target = $region21
    $region20: #{shared_mlp.1} parent=1 // pred_region
      _
    $region21: #{shared_mlp.1} parent=1 // pred_fallthru
      _
    // Predicated region
    $region22: #{shared_mlp.1} parent=1 // pred_check
      _
    $region23: #{shared_mlp.1} parent=1 // pred_check_branch
      %24 = sbr.rel (0) target = $region25
    $region24: #{shared_mlp.1} parent=1 // pred_region
      %s26 = ssub.s32 16384, 16384
      %27 = vsyncadd [#allocation3], %s26
      %s28 = sshll.u32 [#allocation2], 4
      %s29 = int_to_ptr.vmem [resolvable:$true] %s28
      %34 = dma.hbm_to_vmem [thread:$0]  %s5, 16384, %s29, [#allocation3], 1024, 1024, 64
    $region25: #{shared_mlp.1} parent=1 // pred_fallthru
      _
    // Predicated region
    $region26: #{shared_mlp.1} parent=1 // pred_check
      _
    $region27: #{shared_mlp.1} parent=1 // pred_check_branch
      %36 = sbr.rel (0) target = $region29
    $region28: #{shared_mlp.1} parent=1 // pred_region
      _
    $region29: #{shared_mlp.1} parent=1 // pred_fallthru
      _
    // Predicated region
    $region30: #{shared_mlp.1} parent=1 // pred_check
      _
    $region31: #{shared_mlp.1} parent=1 // pred_check_branch
      %38 = sbr.rel (0) target = $region33
    $region32: #{shared_mlp.1} parent=1 // pred_region
      %39 = dma.done [#allocation3], 16384
    $region33: #{shared_mlp.1} parent=1 // pred_fallthru
      _
    %v40 = vld [vmem:[%s0] sm:$0xff]
    %v41 = vld [vmem:[%s0 + $0x8] sm:$0xff]
    %v42 = vld [vmem:[%s0 + $0x10] sm:$0xff]
    %v43 = vld [vmem:[%s0 + $0x18] sm:$0xff]
    %v44 = vld [vmem:[%s0 + $0x20] sm:$0xff]
    %v45 = vld [vmem:[%s0 + $0x28] sm:$0xff]
    %v46 = vld [vmem:[%s0 + $0x30] sm:$0xff]
    %v47 = vld [vmem:[%s0 + $0x38] sm:$0xff]
    %v48 = vld [vmem:[%s0 + $0x40] sm:$0xff]
    %v49 = vld [vmem:[%s0 + $0x48] sm:$0xff]
    %v50 = vld [vmem:[%s0 + $0x50] sm:$0xff]
    %v51 = vld [vmem:[%s0 + $0x58] sm:$0xff]
    %v52 = vld [vmem:[%s0 + $0x60] sm:$0xff]
    %v53 = vld [vmem:[%s0 + $0x68] sm:$0xff]
    %v54 = vld [vmem:[%s0 + $0x70] sm:$0xff]
    %v55 = vld [vmem:[%s0 + $0x78] sm:$0xff]
    %v56 = vld [vmem:[%s0 + $0x80] sm:$0xff]
    %v57 = vld [vmem:[%s0 + $0x88] sm:$0xff]
    %v58 = vld [vmem:[%s0 + $0x90] sm:$0xff]
    %v59 = vld [vmem:[%s0 + $0x98] sm:$0xff]
    %v60 = vld [vmem:[%s0 + $0xa0] sm:$0xff]
    %v61 = vld [vmem:[%s0 + $0xa8] sm:$0xff]
    %v62 = vld [vmem:[%s0 + $0xb0] sm:$0xff]
    %v63 = vld [vmem:[%s0 + $0xb8] sm:$0xff]
    %v64 = vld [vmem:[%s0 + $0xc0] sm:$0xff]
    %v65 = vld [vmem:[%s1] sm:$0x7]
    %v66 = vld [vmem:[%s2] sm:$0x1]
    %68 = vset.pattern.permute.xlu0 0
    %69 = vperm.xlu0 %68, %v40
    %v70 = vpop.permute.xlu0 %69
    %73 = vset.pattern.permute.xlu0 0
    %74 = vperm.xlu0 %73, %v41
    %v75 = vpop.permute.xlu0 %74
    %78 = vset.pattern.permute.xlu0 0
    %79 = vperm.xlu0 %78, %v42
    %v80 = vpop.permute.xlu0 %79
    %83 = vset.pattern.permute.xlu0 0
    %84 = vperm.xlu0 %83, %v43
    %v85 = vpop.permute.xlu0 %84
    %88 = vset.pattern.permute.xlu0 0
    %89 = vperm.xlu0 %88, %v44
    %v90 = vpop.permute.xlu0 %89
    %93 = vset.pattern.permute.xlu0 0
    %94 = vperm.xlu0 %93, %v45
    %v95 = vpop.permute.xlu0 %94
    %98 = vset.pattern.permute.xlu0 0
    %99 = vperm.xlu0 %98, %v46
    %v100 = vpop.permute.xlu0 %99
    %103 = vset.pattern.permute.xlu0 0
    %104 = vperm.xlu0 %103, %v47
    %v105 = vpop.permute.xlu0 %104
    %108 = vset.pattern.permute.xlu0 0
    %109 = vperm.xlu0 %108, %v48
    %v110 = vpop.permute.xlu0 %109
    %113 = vset.pattern.permute.xlu0 0
    %114 = vperm.xlu0 %113, %v49
    %v115 = vpop.permute.xlu0 %114
    %118 = vset.pattern.permute.xlu0 0
    %119 = vperm.xlu0 %118, %v50
    %v120 = vpop.permute.xlu0 %119
    %123 = vset.pattern.permute.xlu0 0
    %124 = vperm.xlu0 %123, %v51
    %v125 = vpop.permute.xlu0 %124
    %128 = vset.pattern.permute.xlu0 0
    %129 = vperm.xlu0 %128, %v52
    %v130 = vpop.permute.xlu0 %129
    %133 = vset.pattern.permute.xlu0 0
    %134 = vperm.xlu0 %133, %v53
    %v135 = vpop.permute.xlu0 %134
    %138 = vset.pattern.permute.xlu0 0
    %139 = vperm.xlu0 %138, %v54
    %v140 = vpop.permute.xlu0 %139
    %143 = vset.pattern.permute.xlu0 0
    %144 = vperm.xlu0 %143, %v55
    %v145 = vpop.permute.xlu0 %144
    %148 = vset.pattern.permute.xlu0 0
    %149 = vperm.xlu0 %148, %v56
    %v150 = vpop.permute.xlu0 %149
    %153 = vset.pattern.permute.xlu0 0
    %154 = vperm.xlu0 %153, %v57
    %v155 = vpop.permute.xlu0 %154
    %158 = vset.pattern.permute.xlu0 0
    %159 = vperm.xlu0 %158, %v58
    %v160 = vpop.permute.xlu0 %159
    %163 = vset.pattern.permute.xlu0 0
    %164 = vperm.xlu0 %163, %v59
    %v165 = vpop.permute.xlu0 %164
    %168 = vset.pattern.permute.xlu0 0
    %169 = vperm.xlu0 %168, %v60
    %v170 = vpop.permute.xlu0 %169
    %173 = vset.pattern.permute.xlu0 0
    %174 = vperm.xlu0 %173, %v61
    %v175 = vpop.permute.xlu0 %174
    %178 = vset.pattern.permute.xlu0 0
    %179 = vperm.xlu0 %178, %v62
    %v180 = vpop.permute.xlu0 %179
    %183 = vset.pattern.permute.xlu0 0
    %184 = vperm.xlu0 %183, %v63
    %v185 = vpop.permute.xlu0 %184
    %188 = vset.pattern.permute.xlu0 0
    %189 = vperm.xlu0 %188, %v64
    %v190 = vpop.permute.xlu0 %189
    %v192 = vlaneseq
    %v193 = vshrl.u32 %v192, 7
    %v194 = vsub.s32 0, %v193
    %v195 = vrot.slane %v65, %v194
    %v196 = vmul.f32 %v70, %v195
    %v197 = vmul.f32 %v75, %v195
    %v198 = vmul.f32 %v80, %v195
    %v199 = vmul.f32 %v85, %v195
    %v200 = vmul.f32 %v90, %v195
    %v201 = vmul.f32 %v95, %v195
    %v202 = vmul.f32 %v100, %v195
    %v203 = vmul.f32 %v105, %v195
    %v204 = vmul.f32 %v110, %v195
    %v205 = vmul.f32 %v115, %v195
    %v206 = vmul.f32 %v120, %v195
    %v207 = vmul.f32 %v125, %v195
    %v208 = vmul.f32 %v130, %v195
    %v209 = vmul.f32 %v135, %v195
    %v210 = vmul.f32 %v140, %v195
    %v211 = vmul.f32 %v145, %v195
    %v212 = vmul.f32 %v150, %v195
    %v213 = vmul.f32 %v155, %v195
    %v214 = vmul.f32 %v160, %v195
    %v215 = vmul.f32 %v165, %v195
    %v216 = vmul.f32 %v170, %v195
    %v217 = vmul.f32 %v175, %v195
    %v218 = vmul.f32 %v180, %v195
    %v219 = vmul.f32 %v185, %v195
    %v220 = vmul.f32 %v190, %v195
    %v222 = vlaneseq
    %v223 = vshrl.u32 %v222, 7
    %v224 = vsub.s32 0, %v223
    %v225 = vrot.slane %v66, %v224
    %v227 = vadd.f32 %v225, %v196
    %v228 = vadd.f32 %v225, %v197
    %v229 = vadd.f32 %v225, %v198
    %v230 = vadd.f32 %v225, %v199
    %v231 = vadd.f32 %v225, %v200
    %v232 = vadd.f32 %v225, %v201
    %v233 = vadd.f32 %v225, %v202
    %v234 = vadd.f32 %v225, %v203
    %v235 = vadd.f32 %v225, %v204
    %v236 = vadd.f32 %v225, %v205
    %v237 = vadd.f32 %v225, %v206
    %v238 = vadd.f32 %v225, %v207
    %v239 = vadd.f32 %v225, %v208
    %v240 = vadd.f32 %v225, %v209
    %v241 = vadd.f32 %v225, %v210
    %v242 = vadd.f32 %v225, %v211
    %v243 = vadd.f32 %v225, %v212
    %v244 = vadd.f32 %v225, %v213
    %v245 = vadd.f32 %v225, %v214
    %v246 = vadd.f32 %v225, %v215
    %v247 = vadd.f32 %v225, %v216
    %v248 = vadd.f32 %v225, %v217
    %v249 = vadd.f32 %v225, %v218
    %v250 = vadd.f32 %v225, %v219
    %v251 = vadd.f32 %v225, %v220
    %252 = vset.pattern.permute.xlu0 1
    %253 = vperm.xlu0 %252, %v40
    %v254 = vpop.permute.xlu0 %253
    %256 = vset.pattern.permute.xlu0 1
    %257 = vperm.xlu0 %256, %v41
    %v258 = vpop.permute.xlu0 %257
    %260 = vset.pattern.permute.xlu0 1
    %261 = vperm.xlu0 %260, %v42
    %v262 = vpop.permute.xlu0 %261
    %264 = vset.pattern.permute.xlu0 1
    %265 = vperm.xlu0 %264, %v43
    %v266 = vpop.permute.xlu0 %265
    %268 = vset.pattern.permute.xlu0 1
    %269 = vperm.xlu0 %268, %v44
    %v270 = vpop.permute.xlu0 %269
    %272 = vset.pattern.permute.xlu0 1
    %273 = vperm.xlu0 %272, %v45
    %v274 = vpop.permute.xlu0 %273
    %276 = vset.pattern.permute.xlu0 1
    %277 = vperm.xlu0 %276, %v46
    %v278 = vpop.permute.xlu0 %277
    %280 = vset.pattern.permute.xlu0 1
    %281 = vperm.xlu0 %280, %v47
    %v282 = vpop.permute.xlu0 %281
    %284 = vset.pattern.permute.xlu0 1
    %285 = vperm.xlu0 %284, %v48
    %v286 = vpop.permute.xlu0 %285
    %288 = vset.pattern.permute.xlu0 1
    %289 = vperm.xlu0 %288, %v49
    %v290 = vpop.permute.xlu0 %289
    %292 = vset.pattern.permute.xlu0 1
    %293 = vperm.xlu0 %292, %v50
    %v294 = vpop.permute.xlu0 %293
    %296 = vset.pattern.permute.xlu0 1
    %297 = vperm.xlu0 %296, %v51
    %v298 = vpop.permute.xlu0 %297
    %300 = vset.pattern.permute.xlu0 1
    %301 = vperm.xlu0 %300, %v52
    %v302 = vpop.permute.xlu0 %301
    %304 = vset.pattern.permute.xlu0 1
    %305 = vperm.xlu0 %304, %v53
    %v306 = vpop.permute.xlu0 %305
    %308 = vset.pattern.permute.xlu0 1
    %309 = vperm.xlu0 %308, %v54
    %v310 = vpop.permute.xlu0 %309
    %312 = vset.pattern.permute.xlu0 1
    %313 = vperm.xlu0 %312, %v55
    %v314 = vpop.permute.xlu0 %313
    %316 = vset.pattern.permute.xlu0 1
    %317 = vperm.xlu0 %316, %v56
    %v318 = vpop.permute.xlu0 %317
    %320 = vset.pattern.permute.xlu0 1
    %321 = vperm.xlu0 %320, %v57
    %v322 = vpop.permute.xlu0 %321
    %324 = vset.pattern.permute.xlu0 1
    %325 = vperm.xlu0 %324, %v58
    %v326 = vpop.permute.xlu0 %325
    %328 = vset.pattern.permute.xlu0 1
    %329 = vperm.xlu0 %328, %v59
    %v330 = vpop.permute.xlu0 %329
    %332 = vset.pattern.permute.xlu0 1
    %333 = vperm.xlu0 %332, %v60
    %v334 = vpop.permute.xlu0 %333
    %336 = vset.pattern.permute.xlu0 1
    %337 = vperm.xlu0 %336, %v61
    %v338 = vpop.permute.xlu0 %337
    %340 = vset.pattern.permute.xlu0 1
    %341 = vperm.xlu0 %340, %v62
    %v342 = vpop.permute.xlu0 %341
    %344 = vset.pattern.permute.xlu0 1
    %345 = vperm.xlu0 %344, %v63
    %v346 = vpop.permute.xlu0 %345
    %348 = vset.pattern.permute.xlu0 1
    %349 = vperm.xlu0 %348, %v64
    %v350 = vpop.permute.xlu0 %349
    %v352 = vlaneseq
    %v353 = vshrl.u32 %v352, 7
    %v354 = vsub.s32 1, %v353
    %v355 = vrot.slane %v65, %v354
    %v356 = vmul.f32 %v254, %v355
    %v357 = vmul.f32 %v258, %v355
    %v358 = vmul.f32 %v262, %v355
    %v359 = vmul.f32 %v266, %v355
    %v360 = vmul.f32 %v270, %v355
    %v361 = vmul.f32 %v274, %v355
    %v362 = vmul.f32 %v278, %v355
    %v363 = vmul.f32 %v282, %v355
    %v364 = vmul.f32 %v286, %v355
    %v365 = vmul.f32 %v290, %v355
    %v366 = vmul.f32 %v294, %v355
    %v367 = vmul.f32 %v298, %v355
    %v368 = vmul.f32 %v302, %v355
    %v369 = vmul.f32 %v306, %v355
    %v370 = vmul.f32 %v310, %v355
    %v371 = vmul.f32 %v314, %v355
    %v372 = vmul.f32 %v318, %v355
    %v373 = vmul.f32 %v322, %v355
    %v374 = vmul.f32 %v326, %v355
    %v375 = vmul.f32 %v330, %v355
    %v376 = vmul.f32 %v334, %v355
    %v377 = vmul.f32 %v338, %v355
    %v378 = vmul.f32 %v342, %v355
    %v379 = vmul.f32 %v346, %v355
    %v380 = vmul.f32 %v350, %v355
    %v381 = vadd.f32 %v227, %v356
    %v382 = vadd.f32 %v228, %v357
    %v383 = vadd.f32 %v229, %v358
    %v384 = vadd.f32 %v230, %v359
    %v385 = vadd.f32 %v231, %v360
    %v386 = vadd.f32 %v232, %v361
    %v387 = vadd.f32 %v233, %v362
    %v388 = vadd.f32 %v234, %v363
    %v389 = vadd.f32 %v235, %v364
    %v390 = vadd.f32 %v236, %v365
    %v391 = vadd.f32 %v237, %v366
    %v392 = vadd.f32 %v238, %v367
    %v393 = vadd.f32 %v239, %v368
    %v394 = vadd.f32 %v240, %v369
    %v395 = vadd.f32 %v241, %v370
    %v396 = vadd.f32 %v242, %v371
    %v397 = vadd.f32 %v243, %v372
    %v398 = vadd.f32 %v244, %v373
    %v399 = vadd.f32 %v245, %v374
    %v400 = vadd.f32 %v246, %v375
    %v401 = vadd.f32 %v247, %v376
    %v402 = vadd.f32 %v248, %v377
    %v403 = vadd.f32 %v249, %v378
    %v404 = vadd.f32 %v250, %v379
    %v405 = vadd.f32 %v251, %v380
    %406 = vset.pattern.permute.xlu0 2
    %407 = vperm.xlu0 %406, %v40
    %v408 = vpop.permute.xlu0 %407
    %410 = vset.pattern.permute.xlu0 2
    %411 = vperm.xlu0 %410, %v41
    %v412 = vpop.permute.xlu0 %411
    %414 = vset.pattern.permute.xlu0 2
    %415 = vperm.xlu0 %414, %v42
    %v416 = vpop.permute.xlu0 %415
    %418 = vset.pattern.permute.xlu0 2
    %419 = vperm.xlu0 %418, %v43
    %v420 = vpop.permute.xlu0 %419
    %422 = vset.pattern.permute.xlu0 2
    %423 = vperm.xlu0 %422, %v44
    %v424 = vpop.permute.xlu0 %423
    %426 = vset.pattern.permute.xlu0 2
    %427 = vperm.xlu0 %426, %v45
    %v428 = vpop.permute.xlu0 %427
    %430 = vset.pattern.permute.xlu0 2
    %431 = vperm.xlu0 %430, %v46
    %v432 = vpop.permute.xlu0 %431
    %434 = vset.pattern.permute.xlu0 2
    %435 = vperm.xlu0 %434, %v47
    %v436 = vpop.permute.xlu0 %435
    %438 = vset.pattern.permute.xlu0 2
    %439 = vperm.xlu0 %438, %v48
    %v440 = vpop.permute.xlu0 %439
    %442 = vset.pattern.permute.xlu0 2
    %443 = vperm.xlu0 %442, %v49
    %v444 = vpop.permute.xlu0 %443
    %446 = vset.pattern.permute.xlu0 2
    %447 = vperm.xlu0 %446, %v50
    %v448 = vpop.permute.xlu0 %447
    %450 = vset.pattern.permute.xlu0 2
    %451 = vperm.xlu0 %450, %v51
    %v452 = vpop.permute.xlu0 %451
    %454 = vset.pattern.permute.xlu0 2
    %455 = vperm.xlu0 %454, %v52
    %v456 = vpop.permute.xlu0 %455
    %458 = vset.pattern.permute.xlu0 2
    %459 = vperm.xlu0 %458, %v53
    %v460 = vpop.permute.xlu0 %459
    %462 = vset.pattern.permute.xlu0 2
    %463 = vperm.xlu0 %462, %v54
    %v464 = vpop.permute.xlu0 %463
    %466 = vset.pattern.permute.xlu0 2
    %467 = vperm.xlu0 %466, %v55
    %v468 = vpop.permute.xlu0 %467
    %470 = vset.pattern.permute.xlu0 2
    %471 = vperm.xlu0 %470, %v56
    %v472 = vpop.permute.xlu0 %471
    %474 = vset.pattern.permute.xlu0 2
    %475 = vperm.xlu0 %474, %v57
    %v476 = vpop.permute.xlu0 %475
    %478 = vset.pattern.permute.xlu0 2
    %479 = vperm.xlu0 %478, %v58
    %v480 = vpop.permute.xlu0 %479
    %482 = vset.pattern.permute.xlu0 2
    %483 = vperm.xlu0 %482, %v59
    %v484 = vpop.permute.xlu0 %483
    %486 = vset.pattern.permute.xlu0 2
    %487 = vperm.xlu0 %486, %v60
    %v488 = vpop.permute.xlu0 %487
    %490 = vset.pattern.permute.xlu0 2
    %491 = vperm.xlu0 %490, %v61
    %v492 = vpop.permute.xlu0 %491
    %494 = vset.pattern.permute.xlu0 2
    %495 = vperm.xlu0 %494, %v62
    %v496 = vpop.permute.xlu0 %495
    %498 = vset.pattern.permute.xlu0 2
    %499 = vperm.xlu0 %498, %v63
    %v500 = vpop.permute.xlu0 %499
    %502 = vset.pattern.permute.xlu0 2
    %503 = vperm.xlu0 %502, %v64
    %v504 = vpop.permute.xlu0 %503
    %v506 = vlaneseq
    %v507 = vshrl.u32 %v506, 7
    %v508 = vsub.s32 2, %v507
    %v509 = vrot.slane %v65, %v508
    %v510 = vmul.f32 %v408, %v509
    %v511 = vmul.f32 %v412, %v509
    %v512 = vmul.f32 %v416, %v509
    %v513 = vmul.f32 %v420, %v509
    %v514 = vmul.f32 %v424, %v509
    %v515 = vmul.f32 %v428, %v509
    %v516 = vmul.f32 %v432, %v509
    %v517 = vmul.f32 %v436, %v509
    %v518 = vmul.f32 %v440, %v509
    %v519 = vmul.f32 %v444, %v509
    %v520 = vmul.f32 %v448, %v509
    %v521 = vmul.f32 %v452, %v509
    %v522 = vmul.f32 %v456, %v509
    %v523 = vmul.f32 %v460, %v509
    %v524 = vmul.f32 %v464, %v509
    %v525 = vmul.f32 %v468, %v509
    %v526 = vmul.f32 %v472, %v509
    %v527 = vmul.f32 %v476, %v509
    %v528 = vmul.f32 %v480, %v509
    %v529 = vmul.f32 %v484, %v509
    %v530 = vmul.f32 %v488, %v509
    %v531 = vmul.f32 %v492, %v509
    %v532 = vmul.f32 %v496, %v509
    %v533 = vmul.f32 %v500, %v509
    %v534 = vmul.f32 %v504, %v509
    %v535 = vadd.f32 %v381, %v510
    %v536 = vadd.f32 %v382, %v511
    %v537 = vadd.f32 %v383, %v512
    %v538 = vadd.f32 %v384, %v513
    %v539 = vadd.f32 %v385, %v514
    %v540 = vadd.f32 %v386, %v515
    %v541 = vadd.f32 %v387, %v516
    %v542 = vadd.f32 %v388, %v517
    %v543 = vadd.f32 %v389, %v518
    %v544 = vadd.f32 %v390, %v519
    %v545 = vadd.f32 %v391, %v520
    %v546 = vadd.f32 %v392, %v521
    %v547 = vadd.f32 %v393, %v522
    %v548 = vadd.f32 %v394, %v523
    %v549 = vadd.f32 %v395, %v524
    %v550 = vadd.f32 %v396, %v525
    %v551 = vadd.f32 %v397, %v526
    %v552 = vadd.f32 %v398, %v527
    %v553 = vadd.f32 %v399, %v528
    %v554 = vadd.f32 %v400, %v529
    %v555 = vadd.f32 %v401, %v530
    %v556 = vadd.f32 %v402, %v531
    %v557 = vadd.f32 %v403, %v532
    %v558 = vadd.f32 %v404, %v533
    %v559 = vadd.f32 %v405, %v534
    %v560 = vmax.f32 %v535, 0.0
    %v561 = vmax.f32 %v536, 0.0
    %v562 = vmax.f32 %v537, 0.0
    %v563 = vmax.f32 %v538, 0.0
    %v564 = vmax.f32 %v539, 0.0
    %v565 = vmax.f32 %v540, 0.0
    %v566 = vmax.f32 %v541, 0.0
    %v567 = vmax.f32 %v542, 0.0
    %v568 = vmax.f32 %v543, 0.0
    %v569 = vmax.f32 %v544, 0.0
    %v570 = vmax.f32 %v545, 0.0
    %v571 = vmax.f32 %v546, 0.0
    %v572 = vmax.f32 %v547, 0.0
    %v573 = vmax.f32 %v548, 0.0
    %v574 = vmax.f32 %v549, 0.0
    %v575 = vmax.f32 %v550, 0.0
    %v576 = vmax.f32 %v551, 0.0
    %v577 = vmax.f32 %v552, 0.0
    %v578 = vmax.f32 %v553, 0.0
    %v579 = vmax.f32 %v554, 0.0
    %v580 = vmax.f32 %v555, 0.0
    %v581 = vmax.f32 %v556, 0.0
    %v582 = vmax.f32 %v557, 0.0
    %v583 = vmax.f32 %v558, 0.0
    %v584 = vmax.f32 %v559, 0.0
    %v585 = vld [vmem:[%s3] sm:$0xff]
    %v586 = vld [vmem:[%s3 + $0x8] sm:$0xff]
    %v587 = vld [vmem:[%s3 + $0x10] sm:$0xff]
    %v588 = vld [vmem:[%s3 + $0x18] sm:$0xff]
    %v589 = vld [vmem:[%s3 + $0x20] sm:$0xff]
    %v590 = vld [vmem:[%s3 + $0x28] sm:$0xff]
    %v591 = vld [vmem:[%s3 + $0x30] sm:$0xff]
    %v592 = vld [vmem:[%s3 + $0x38] sm:$0xff]
    %v593 = vld [vmem:[%s4] sm:$0x1]
    %v595 = vlaneseq
    %v596 = vshrl.u32 %v595, 7
    %v597 = vsub.s32 0, %v596
    %v598 = vrot.slane %v593, %v597
    %vm600 = vcmask 523264
    %v602 = vsel %vm600, %v560, 0
    %v605 = vsel %vm600, %v561, 0
    %v608 = vsel %vm600, %v562, 0
    %v611 = vsel %vm600, %v563, 0
    %v614 = vsel %vm600, %v564, 0
    %v617 = vsel %vm600, %v565, 0
    %v620 = vsel %vm600, %v566, 0
    %v623 = vsel %vm600, %v567, 0
    %v626 = vsel %vm600, %v568, 0
    %v629 = vsel %vm600, %v569, 0
    %v632 = vsel %vm600, %v570, 0
    %v635 = vsel %vm600, %v571, 0
    %v638 = vsel %vm600, %v572, 0
    %v641 = vsel %vm600, %v573, 0
    %v644 = vsel %vm600, %v574, 0
    %v647 = vsel %vm600, %v575, 0
    %v650 = vsel %vm600, %v576, 0
    %v653 = vsel %vm600, %v577, 0
    %v656 = vsel %vm600, %v578, 0
    %v659 = vsel %vm600, %v579, 0
    %v662 = vsel %vm600, %v580, 0
    %v665 = vsel %vm600, %v581, 0
    %v668 = vsel %vm600, %v582, 0
    %v671 = vsel %vm600, %v583, 0
    %v674 = vsel %vm600, %v584, 0
    %676 = vmatprep.subr.mxu0 0.0
    %677 = vmatpush1.msra.mxu0 0.0
    %678 = vmatprep.subr.mxu0 0.0
    %679 = vmatpush1.msra.mxu0 0.0
    %680 = vmatprep.subr.mxu0 0.0
    %681 = vmatpush1.msra.mxu0 0.0
    %682 = vmatprep.subr.mxu0 0.0
    %683 = vmatpush1.msra.mxu0 0.0
    %684 = vmatprep.subr.mxu0 0.0
    %685 = vmatpush1.msra.mxu0 0.0
    %686 = vmatprep.subr.mxu0 0.0
    %687 = vmatpush1.msra.mxu0 0.0
    %688 = vmatprep.subr.mxu0 0.0
    %689 = vmatpush1.msra.mxu0 0.0
    %690 = vmatprep.subr.mxu0 0.0
    %691 = vmatpush1.msra.mxu0 0.0
    %692 = vmatprep.subr.mxu0 0.0
    %693 = vmatpush1.msra.mxu0 %v592
    %694 = vmatprep.subr.mxu0 0.0
    %695 = vmatpush1.msra.mxu0 %v591
    %696 = vmatprep.subr.mxu0 0.0
    %697 = vmatpush1.msra.mxu0 %v590
    %698 = vmatprep.subr.mxu0 0.0
    %699 = vmatpush1.msra.mxu0 %v589
    %700 = vmatprep.subr.mxu0 0.0
    %701 = vmatpush1.msra.mxu0 %v588
    %702 = vmatprep.subr.mxu0 0.0
    %703 = vmatpush1.msra.mxu0 %v587
    %704 = vmatprep.subr.mxu0 0.0
    %705 = vmatpush1.msra.mxu0 %v586
    %706 = vmatprep.subr.mxu0 0.0
    %707 = vmatpush1.msra.mxu0 %v585
    %708 = vmatprep.subr.mxu0 0.0
    %709 = vmatpush2.msra.mxu0 0.0
    %710 = vmatprep.subr.mxu0 0.0
    %711 = vmatpush2.msra.mxu0 0.0
    %712 = vmatprep.subr.mxu0 0.0
    %713 = vmatpush2.msra.mxu0 0.0
    %714 = vmatprep.subr.mxu0 0.0
    %715 = vmatpush2.msra.mxu0 0.0
    %716 = vmatprep.subr.mxu0 0.0
    %717 = vmatpush2.msra.mxu0 0.0
    %718 = vmatprep.subr.mxu0 0.0
    %719 = vmatpush2.msra.mxu0 0.0
    %720 = vmatprep.subr.mxu0 0.0
    %721 = vmatpush2.msra.mxu0 0.0
    %722 = vmatprep.subr.mxu0 0.0
    %723 = vmatpush2.msra.mxu0 0.0
    %724 = vmatprep.subr.mxu0 0.0
    %725 = vmatpush2.msra.mxu0 0.0
    %726 = vmatprep.subr.mxu0 0.0
    %727 = vmatpush2.msra.mxu0 0.0
    %728 = vmatprep.subr.mxu0 0.0
    %729 = vmatpush2.msra.mxu0 0.0
    %730 = vmatprep.subr.mxu0 0.0
    %731 = vmatpush2.msra.mxu0 0.0
    %732 = vmatprep.subr.mxu0 0.0
    %733 = vmatpush2.msra.mxu0 0.0
    %734 = vmatprep.subr.mxu0 0.0
    %735 = vmatpush2.msra.mxu0 0.0
    %736 = vmatprep.subr.mxu0 0.0
    %737 = vmatpush2.msra.mxu0 0.0
    %738 = vmatprep.subr.mxu0 0.0
    %739 = vmatpush2.msra.mxu0 0.0
    %740 = vmatprep.mubr.f32.mxu0 0.0
    %741 = vmatmul.mubr.f32.gmra.mxu0 %v602
    %v742 = vpop.f32.mrf.mxu0
    %v743 = vadd.f32 %v598, %v742
    %v744 = vpop.f32.mrf.mxu0
    %745 = vmatprep.mubr.f32.mxu0 0.0
    %746 = vmatmul.mubr.f32.gmra.mxu0 %v605
    %v747 = vpop.f32.mrf.mxu0
    %v748 = vadd.f32 %v598, %v747
    %v749 = vpop.f32.mrf.mxu0
    %750 = vmatprep.mubr.f32.mxu0 0.0
    %751 = vmatmul.mubr.f32.gmra.mxu0 %v608
    %v752 = vpop.f32.mrf.mxu0
    %v753 = vadd.f32 %v598, %v752
    %v754 = vpop.f32.mrf.mxu0
    %755 = vmatprep.mubr.f32.mxu0 0.0
    %756 = vmatmul.mubr.f32.gmra.mxu0 %v611
    %v757 = vpop.f32.mrf.mxu0
    %v758 = vadd.f32 %v598, %v757
    %v759 = vpop.f32.mrf.mxu0
    %760 = vmatprep.mubr.f32.mxu0 0.0
    %761 = vmatmul.mubr.f32.gmra.mxu0 %v614
    %v762 = vpop.f32.mrf.mxu0
    %v763 = vadd.f32 %v598, %v762
    %v764 = vpop.f32.mrf.mxu0
    %765 = vmatprep.mubr.f32.mxu0 0.0
    %766 = vmatmul.mubr.f32.gmra.mxu0 %v617
    %v767 = vpop.f32.mrf.mxu0
    %v768 = vadd.f32 %v598, %v767
    %v769 = vpop.f32.mrf.mxu0
    %770 = vmatprep.mubr.f32.mxu0 0.0
    %771 = vmatmul.mubr.f32.gmra.mxu0 %v620
    %v772 = vpop.f32.mrf.mxu0
    %v773 = vadd.f32 %v598, %v772
    %v774 = vpop.f32.mrf.mxu0
    %775 = vmatprep.mubr.f32.mxu0 0.0
    %776 = vmatmul.mubr.f32.gmra.mxu0 %v623
    %v777 = vpop.f32.mrf.mxu0
    %v778 = vadd.f32 %v598, %v777
    %v779 = vpop.f32.mrf.mxu0
    %780 = vmatprep.mubr.f32.mxu0 0.0
    %781 = vmatmul.mubr.f32.gmra.mxu0 %v626
    %v782 = vpop.f32.mrf.mxu0
    %v783 = vadd.f32 %v598, %v782
    %v784 = vpop.f32.mrf.mxu0
    %785 = vmatprep.mubr.f32.mxu0 0.0
    %786 = vmatmul.mubr.f32.gmra.mxu0 %v629
    %v787 = vpop.f32.mrf.mxu0
    %v788 = vadd.f32 %v598, %v787
    %v789 = vpop.f32.mrf.mxu0
    %790 = vmatprep.mubr.f32.mxu0 0.0
    %791 = vmatmul.mubr.f32.gmra.mxu0 %v632
    %v792 = vpop.f32.mrf.mxu0
    %v793 = vadd.f32 %v598, %v792
    %v794 = vpop.f32.mrf.mxu0
    %795 = vmatprep.mubr.f32.mxu0 0.0
    %796 = vmatmul.mubr.f32.gmra.mxu0 %v635
    %v797 = vpop.f32.mrf.mxu0
    %v798 = vadd.f32 %v598, %v797
    %v799 = vpop.f32.mrf.mxu0
    %800 = vmatprep.mubr.f32.mxu0 0.0
    %801 = vmatmul.mubr.f32.gmra.mxu0 %v638
    %v802 = vpop.f32.mrf.mxu0
    %v803 = vadd.f32 %v598, %v802
    %v804 = vpop.f32.mrf.mxu0
    %805 = vmatprep.mubr.f32.mxu0 0.0
    %806 = vmatmul.mubr.f32.gmra.mxu0 %v641
    %v807 = vpop.f32.mrf.mxu0
    %v808 = vadd.f32 %v598, %v807
    %v809 = vpop.f32.mrf.mxu0
    %810 = vmatprep.mubr.f32.mxu0 0.0
    %811 = vmatmul.mubr.f32.gmra.mxu0 %v644
    %v812 = vpop.f32.mrf.mxu0
    %v813 = vadd.f32 %v598, %v812
    %v814 = vpop.f32.mrf.mxu0
    %815 = vmatprep.mubr.f32.mxu0 0.0
    %816 = vmatmul.mubr.f32.gmra.mxu0 %v647
    %v817 = vpop.f32.mrf.mxu0
    %v818 = vadd.f32 %v598, %v817
    %v819 = vpop.f32.mrf.mxu0
    %820 = vmatprep.mubr.f32.mxu0 0.0
    %821 = vmatmul.mubr.f32.gmra.mxu0 %v650
    %v822 = vpop.f32.mrf.mxu0
    %v823 = vadd.f32 %v598, %v822
    %v824 = vpop.f32.mrf.mxu0
    %825 = vmatprep.mubr.f32.mxu0 0.0
    %826 = vmatmul.mubr.f32.gmra.mxu0 %v653
    %v827 = vpop.f32.mrf.mxu0
    %v828 = vadd.f32 %v598, %v827
    %v829 = vpop.f32.mrf.mxu0
    %830 = vmatprep.mubr.f32.mxu0 0.0
    %831 = vmatmul.mubr.f32.gmra.mxu0 %v656
    %v832 = vpop.f32.mrf.mxu0
    %v833 = vadd.f32 %v598, %v832
    %v834 = vpop.f32.mrf.mxu0
    %835 = vmatprep.mubr.f32.mxu0 0.0
    %836 = vmatmul.mubr.f32.gmra.mxu0 %v659
    %v837 = vpop.f32.mrf.mxu0
    %v838 = vadd.f32 %v598, %v837
    %v839 = vpop.f32.mrf.mxu0
    %840 = vmatprep.mubr.f32.mxu0 0.0
    %841 = vmatmul.mubr.f32.gmra.mxu0 %v662
    %v842 = vpop.f32.mrf.mxu0
    %v843 = vadd.f32 %v598, %v842
    %v844 = vpop.f32.mrf.mxu0
    %845 = vmatprep.mubr.f32.mxu0 0.0
    %846 = vmatmul.mubr.f32.gmra.mxu0 %v665
    %v847 = vpop.f32.mrf.mxu0
    %v848 = vadd.f32 %v598, %v847
    %v849 = vpop.f32.mrf.mxu0
    %850 = vmatprep.mubr.f32.mxu0 0.0
    %851 = vmatmul.mubr.f32.gmra.mxu0 %v668
    %v852 = vpop.f32.mrf.mxu0
    %v853 = vadd.f32 %v598, %v852
    %v854 = vpop.f32.mrf.mxu0
    %855 = vmatprep.mubr.f32.mxu0 0.0
    %856 = vmatmul.mubr.f32.gmra.mxu0 %v671
    %v857 = vpop.f32.mrf.mxu0
    %v858 = vadd.f32 %v598, %v857
    %v859 = vpop.f32.mrf.mxu0
    %860 = vmatprep.mubr.f32.mxu0 0.0
    %861 = vmatmul.mubr.f32.gmra.mxu0 %v674
    %v862 = vpop.f32.mrf.mxu0
    %v863 = vadd.f32 %v598, %v862
    %v864 = vpop.f32.mrf.mxu0
    %865 = vdwg.mxu0
    %v866 = vmax.f32 %v743, 0.0
    %v867 = vmax.f32 %v748, 0.0
    %v868 = vmax.f32 %v753, 0.0
    %v869 = vmax.f32 %v758, 0.0
    %v870 = vmax.f32 %v763, 0.0
    %v871 = vmax.f32 %v768, 0.0
    %v872 = vmax.f32 %v773, 0.0
    %v873 = vmax.f32 %v778, 0.0
    %v874 = vmax.f32 %v783, 0.0
    %v875 = vmax.f32 %v788, 0.0
    %v876 = vmax.f32 %v793, 0.0
    %v877 = vmax.f32 %v798, 0.0
    %v878 = vmax.f32 %v803, 0.0
    %v879 = vmax.f32 %v808, 0.0
    %v880 = vmax.f32 %v813, 0.0
    %v881 = vmax.f32 %v818, 0.0
    %v882 = vmax.f32 %v823, 0.0
    %v883 = vmax.f32 %v828, 0.0
    %v884 = vmax.f32 %v833, 0.0
    %v885 = vmax.f32 %v838, 0.0
    %v886 = vmax.f32 %v843, 0.0
    %v887 = vmax.f32 %v848, 0.0
    %v888 = vmax.f32 %v853, 0.0
    %v889 = vmax.f32 %v858, 0.0
    %v890 = vmax.f32 %v863, 0.0
    %v891 = vld [vmem:[#allocation2] sm:$0xff]
    %v892 = vld [vmem:[#allocation2 + $0x8] sm:$0xff]
    %v893 = vld [vmem:[#allocation2 + $0x10] sm:$0xff]
    %v894 = vld [vmem:[#allocation2 + $0x18] sm:$0xff]
    %v895 = vld [vmem:[#allocation2 + $0x20] sm:$0xff]
    %v896 = vld [vmem:[#allocation2 + $0x28] sm:$0xff]
    %v897 = vld [vmem:[#allocation2 + $0x30] sm:$0xff]
    %v898 = vld [vmem:[#allocation2 + $0x38] sm:$0xff]
    %v899 = vld [vmem:[#allocation2 + $0x40] sm:$0xff]
    %v900 = vld [vmem:[#allocation2 + $0x48] sm:$0xff]
    %v901 = vld [vmem:[#allocation2 + $0x50] sm:$0xff]
    %v902 = vld [vmem:[#allocation2 + $0x58] sm:$0xff]
    %v903 = vld [vmem:[#allocation2 + $0x60] sm:$0xff]
    %v904 = vld [vmem:[#allocation2 + $0x68] sm:$0xff]
    %v905 = vld [vmem:[#allocation2 + $0x70] sm:$0xff]
    %v906 = vld [vmem:[#allocation2 + $0x78] sm:$0xff]
    %v907 = vld [vmem:[#allocation2 + $0x80] sm:$0xff]
    %v908 = vld [vmem:[#allocation2 + $0x88] sm:$0xff]
    %v909 = vld [vmem:[#allocation2 + $0x90] sm:$0xff]
    %v910 = vld [vmem:[#allocation2 + $0x98] sm:$0xff]
    %v911 = vld [vmem:[#allocation2 + $0xa0] sm:$0xff]
    %v912 = vld [vmem:[#allocation2 + $0xa8] sm:$0xff]
    %v913 = vld [vmem:[#allocation2 + $0xb0] sm:$0xff]
    %v914 = vld [vmem:[#allocation2 + $0xb8] sm:$0xff]
    %v915 = vld [vmem:[#allocation2 + $0xc0] sm:$0xff]
    %v916 = vld [vmem:[#allocation2 + $0xc8] sm:$0xff]
    %v917 = vld [vmem:[#allocation2 + $0xd0] sm:$0xff]
    %v918 = vld [vmem:[#allocation2 + $0xd8] sm:$0xff]
    %v919 = vld [vmem:[#allocation2 + $0xe0] sm:$0xff]
    %v920 = vld [vmem:[#allocation2 + $0xe8] sm:$0xff]
    %v921 = vld [vmem:[#allocation2 + $0xf0] sm:$0xff]
    %v922 = vld [vmem:[#allocation2 + $0xf8] sm:$0xff]
    %v923 = vld [vmem:[#allocation2 + $0x100] sm:$0xff]
    %v924 = vld [vmem:[#allocation2 + $0x108] sm:$0xff]
    %v925 = vld [vmem:[#allocation2 + $0x110] sm:$0xff]
    %v926 = vld [vmem:[#allocation2 + $0x118] sm:$0xff]
    %v927 = vld [vmem:[#allocation2 + $0x120] sm:$0xff]
    %v928 = vld [vmem:[#allocation2 + $0x128] sm:$0xff]
    %v929 = vld [vmem:[#allocation2 + $0x130] sm:$0xff]
    %v930 = vld [vmem:[#allocation2 + $0x138] sm:$0xff]
    %v931 = vld [vmem:[#allocation2 + $0x140] sm:$0xff]
    %v932 = vld [vmem:[#allocation2 + $0x148] sm:$0xff]
    %v933 = vld [vmem:[#allocation2 + $0x150] sm:$0xff]
    %v934 = vld [vmem:[#allocation2 + $0x158] sm:$0xff]
    %v935 = vld [vmem:[#allocation2 + $0x160] sm:$0xff]
    %v936 = vld [vmem:[#allocation2 + $0x168] sm:$0xff]
    %v937 = vld [vmem:[#allocation2 + $0x170] sm:$0xff]
    %v938 = vld [vmem:[#allocation2 + $0x178] sm:$0xff]
    %v939 = vld [vmem:[#allocation2 + $0x180] sm:$0xff]
    %v940 = vld [vmem:[#allocation2 + $0x188] sm:$0xff]
    %v941 = vld [vmem:[#allocation2 + $0x190] sm:$0xff]
    %v942 = vld [vmem:[#allocation2 + $0x198] sm:$0xff]
    %v943 = vld [vmem:[#allocation2 + $0x1a0] sm:$0xff]
    %v944 = vld [vmem:[#allocation2 + $0x1a8] sm:$0xff]
    %v945 = vld [vmem:[#allocation2 + $0x1b0] sm:$0xff]
    %v946 = vld [vmem:[#allocation2 + $0x1b8] sm:$0xff]
    %v947 = vld [vmem:[#allocation2 + $0x1c0] sm:$0xff]
    %v948 = vld [vmem:[#allocation2 + $0x1c8] sm:$0xff]
    %v949 = vld [vmem:[#allocation2 + $0x1d0] sm:$0xff]
    %v950 = vld [vmem:[#allocation2 + $0x1d8] sm:$0xff]
    %v951 = vld [vmem:[#allocation2 + $0x1e0] sm:$0xff]
    %v952 = vld [vmem:[#allocation2 + $0x1e8] sm:$0xff]
    %v953 = vld [vmem:[#allocation2 + $0x1f0] sm:$0xff]
    %v954 = vld [vmem:[#allocation2 + $0x1f8] sm:$0xff]
    %v955 = vld [vmem:[#allocation2 + $0x200] sm:$0xff]
    %v956 = vld [vmem:[#allocation2 + $0x208] sm:$0xff]
    %v957 = vld [vmem:[#allocation2 + $0x210] sm:$0xff]
    %v958 = vld [vmem:[#allocation2 + $0x218] sm:$0xff]
    %v959 = vld [vmem:[#allocation2 + $0x220] sm:$0xff]
    %v960 = vld [vmem:[#allocation2 + $0x228] sm:$0xff]
    %v961 = vld [vmem:[#allocation2 + $0x230] sm:$0xff]
    %v962 = vld [vmem:[#allocation2 + $0x238] sm:$0xff]
    %v963 = vld [vmem:[#allocation2 + $0x240] sm:$0xff]
    %v964 = vld [vmem:[#allocation2 + $0x248] sm:$0xff]
    %v965 = vld [vmem:[#allocation2 + $0x250] sm:$0xff]
    %v966 = vld [vmem:[#allocation2 + $0x258] sm:$0xff]
    %v967 = vld [vmem:[#allocation2 + $0x260] sm:$0xff]
    %v968 = vld [vmem:[#allocation2 + $0x268] sm:$0xff]
    %v969 = vld [vmem:[#allocation2 + $0x270] sm:$0xff]
    %v970 = vld [vmem:[#allocation2 + $0x278] sm:$0xff]
    %v971 = vld [vmem:[#allocation2 + $0x280] sm:$0xff]
    %v972 = vld [vmem:[#allocation2 + $0x288] sm:$0xff]
    %v973 = vld [vmem:[#allocation2 + $0x290] sm:$0xff]
    %v974 = vld [vmem:[#allocation2 + $0x298] sm:$0xff]
    %v975 = vld [vmem:[#allocation2 + $0x2a0] sm:$0xff]
    %v976 = vld [vmem:[#allocation2 + $0x2a8] sm:$0xff]
    %v977 = vld [vmem:[#allocation2 + $0x2b0] sm:$0xff]
    %v978 = vld [vmem:[#allocation2 + $0x2b8] sm:$0xff]
    %v979 = vld [vmem:[#allocation2 + $0x2c0] sm:$0xff]
    %v980 = vld [vmem:[#allocation2 + $0x2c8] sm:$0xff]
    %v981 = vld [vmem:[#allocation2 + $0x2d0] sm:$0xff]
    %v982 = vld [vmem:[#allocation2 + $0x2d8] sm:$0xff]
    %v983 = vld [vmem:[#allocation2 + $0x2e0] sm:$0xff]
    %v984 = vld [vmem:[#allocation2 + $0x2e8] sm:$0xff]
    %v985 = vld [vmem:[#allocation2 + $0x2f0] sm:$0xff]
    %v986 = vld [vmem:[#allocation2 + $0x2f8] sm:$0xff]
    %v987 = vld [vmem:[#allocation2 + $0x300] sm:$0xff]
    %v988 = vld [vmem:[#allocation2 + $0x308] sm:$0xff]
    %v989 = vld [vmem:[#allocation2 + $0x310] sm:$0xff]
    %v990 = vld [vmem:[#allocation2 + $0x318] sm:$0xff]
    %v991 = vld [vmem:[#allocation2 + $0x320] sm:$0xff]
    %v992 = vld [vmem:[#allocation2 + $0x328] sm:$0xff]
    %v993 = vld [vmem:[#allocation2 + $0x330] sm:$0xff]
    %v994 = vld [vmem:[#allocation2 + $0x338] sm:$0xff]
    %v995 = vld [vmem:[#allocation2 + $0x340] sm:$0xff]
    %v996 = vld [vmem:[#allocation2 + $0x348] sm:$0xff]
    %v997 = vld [vmem:[#allocation2 + $0x350] sm:$0xff]
    %v998 = vld [vmem:[#allocation2 + $0x358] sm:$0xff]
    %v999 = vld [vmem:[#allocation2 + $0x360] sm:$0xff]
    %v1000 = vld [vmem:[#allocation2 + $0x368] sm:$0xff]
    %v1001 = vld [vmem:[#allocation2 + $0x370] sm:$0xff]
    %v1002 = vld [vmem:[#allocation2 + $0x378] sm:$0xff]
    %v1003 = vld [vmem:[#allocation2 + $0x380] sm:$0xff]
    %v1004 = vld [vmem:[#allocation2 + $0x388] sm:$0xff]
    %v1005 = vld [vmem:[#allocation2 + $0x390] sm:$0xff]
    %v1006 = vld [vmem:[#allocation2 + $0x398] sm:$0xff]
    %v1007 = vld [vmem:[#allocation2 + $0x3a0] sm:$0xff]
    %v1008 = vld [vmem:[#allocation2 + $0x3a8] sm:$0xff]
    %v1009 = vld [vmem:[#allocation2 + $0x3b0] sm:$0xff]
    %v1010 = vld [vmem:[#allocation2 + $0x3b8] sm:$0xff]
    %v1011 = vld [vmem:[#allocation2 + $0x3c0] sm:$0xff]
    %v1012 = vld [vmem:[#allocation2 + $0x3c8] sm:$0xff]
    %v1013 = vld [vmem:[#allocation2 + $0x3d0] sm:$0xff]
    %v1014 = vld [vmem:[#allocation2 + $0x3d8] sm:$0xff]
    %v1015 = vld [vmem:[#allocation2 + $0x3e0] sm:$0xff]
    %v1016 = vld [vmem:[#allocation2 + $0x3e8] sm:$0xff]
    %v1017 = vld [vmem:[#allocation2 + $0x3f0] sm:$0xff]
    %v1018 = vld [vmem:[#allocation2 + $0x3f8] sm:$0xff]
    %v1019 = vld [vmem:[%s6] sm:$0xff]
    %v1021 = vlaneseq
    %v1022 = vshrl.u32 %v1021, 7
    %v1023 = vsub.s32 0, %v1022
    %v1024 = vrot.slane %v1019, %v1023
    %v1025 = vlaneseq
    %v1026 = vshrl.u32 %v1025, 7
    %v1027 = vsub.s32 1, %v1026
    %v1028 = vrot.slane %v1019, %v1027
    %v1029 = vlaneseq
    %v1030 = vshrl.u32 %v1029, 7
    %v1031 = vsub.s32 2, %v1030
    %v1032 = vrot.slane %v1019, %v1031
    %v1033 = vlaneseq
    %v1034 = vshrl.u32 %v1033, 7
    %v1035 = vsub.s32 3, %v1034
    %v1036 = vrot.slane %v1019, %v1035
    %v1037 = vlaneseq
    %v1038 = vshrl.u32 %v1037, 7
    %v1039 = vsub.s32 4, %v1038
    %v1040 = vrot.slane %v1019, %v1039
    %v1041 = vlaneseq
    %v1042 = vshrl.u32 %v1041, 7
    %v1043 = vsub.s32 5, %v1042
    %v1044 = vrot.slane %v1019, %v1043
    %v1045 = vlaneseq
    %v1046 = vshrl.u32 %v1045, 7
    %v1047 = vsub.s32 6, %v1046
    %v1048 = vrot.slane %v1019, %v1047
    %v1049 = vlaneseq
    %v1050 = vshrl.u32 %v1049, 7
    %v1051 = vsub.s32 7, %v1050
    %v1052 = vrot.slane %v1019, %v1051
    %1061 = vmatprep.subr.mxu0 %v1012
    %1062 = vmatpush1.msra.mxu0 %v1011
    %1063 = vmatprep.subr.mxu0 %v1004
    %1064 = vmatpush1.msra.mxu0 %v1003
    %1065 = vmatprep.subr.mxu0 %v996
    %1066 = vmatpush1.msra.mxu0 %v995
    %1067 = vmatprep.subr.mxu0 %v988
    %1068 = vmatpush1.msra.mxu0 %v987
    %1069 = vmatprep.subr.mxu0 %v980
    %1070 = vmatpush1.msra.mxu0 %v979
    %1071 = vmatprep.subr.mxu0 %v972
    %1072 = vmatpush1.msra.mxu0 %v971
    %1073 = vmatprep.subr.mxu0 %v964
    %1074 = vmatpush1.msra.mxu0 %v963
    %1075 = vmatprep.subr.mxu0 %v956
    %1076 = vmatpush1.msra.mxu0 %v955
    %1077 = vmatprep.subr.mxu0 %v948
    %1078 = vmatpush1.msra.mxu0 %v947
    %1079 = vmatprep.subr.mxu0 %v940
    %1080 = vmatpush1.msra.mxu0 %v939
    %1081 = vmatprep.subr.mxu0 %v932
    %1082 = vmatpush1.msra.mxu0 %v931
    %1083 = vmatprep.subr.mxu0 %v924
    %1084 = vmatpush1.msra.mxu0 %v923
    %1085 = vmatprep.subr.mxu0 %v916
    %1086 = vmatpush1.msra.mxu0 %v915
    %1087 = vmatprep.subr.mxu0 %v908
    %1088 = vmatpush1.msra.mxu0 %v907
    %1089 = vmatprep.subr.mxu0 %v900
    %1090 = vmatpush1.msra.mxu0 %v899
    %1091 = vmatprep.subr.mxu0 %v892
    %1092 = vmatpush1.msra.mxu0 %v891
    %1093 = vmatprep.subr.mxu0 0.0
    %1094 = vmatpush2.msra.mxu0 0.0
    %1095 = vmatprep.subr.mxu0 0.0
    %1096 = vmatpush2.msra.mxu0 0.0
    %1097 = vmatprep.subr.mxu0 0.0
    %1098 = vmatpush2.msra.mxu0 0.0
    %1099 = vmatprep.subr.mxu0 0.0
    %1100 = vmatpush2.msra.mxu0 0.0
    %1101 = vmatprep.subr.mxu0 0.0
    %1102 = vmatpush2.msra.mxu0 0.0
    %1103 = vmatprep.subr.mxu0 0.0
    %1104 = vmatpush2.msra.mxu0 0.0
    %1105 = vmatprep.subr.mxu0 0.0
    %1106 = vmatpush2.msra.mxu0 0.0
    %1107 = vmatprep.subr.mxu0 0.0
    %1108 = vmatpush2.msra.mxu0 0.0
    %1109 = vmatprep.subr.mxu0 0.0
    %1110 = vmatpush2.msra.mxu0 0.0
    %1111 = vmatprep.subr.mxu0 0.0
    %1112 = vmatpush2.msra.mxu0 0.0
    %1113 = vmatprep.subr.mxu0 0.0
    %1114 = vmatpush2.msra.mxu0 0.0
    %1115 = vmatprep.subr.mxu0 0.0
    %1116 = vmatpush2.msra.mxu0 0.0
    %1117 = vmatprep.subr.mxu0 0.0
    %1118 = vmatpush2.msra.mxu0 0.0
    %1119 = vmatprep.subr.mxu0 0.0
    %1120 = vmatpush2.msra.mxu0 0.0
    %1121 = vmatprep.subr.mxu0 0.0
    %1122 = vmatpush2.msra.mxu0 0.0
    %1123 = vmatprep.subr.mxu0 0.0
    %1124 = vmatpush2.msra.mxu0 0.0
    %1125 = vmatprep.mubr.f32.mxu0 0.0
    %1126 = vmatmul.mubr.f32.gmra.mxu0 %v866
    %v1127 = vpop.f32.mrf.mxu0
    %v1128 = vadd.f32 %v1024, %v1127
    %v1129 = vpop.f32.mrf.mxu0
    %v1130 = vadd.f32 %v1028, %v1129
    %1131 = vmatprep.mubr.f32.mxu0 0.0
    %1132 = vmatmul.mubr.f32.gmra.mxu0 %v867
    %v1133 = vpop.f32.mrf.mxu0
    %v1134 = vadd.f32 %v1024, %v1133
    %v1135 = vpop.f32.mrf.mxu0
    %v1136 = vadd.f32 %v1028, %v1135
    %1137 = vmatprep.mubr.f32.mxu0 0.0
    %1138 = vmatmul.mubr.f32.gmra.mxu0 %v868
    %v1139 = vpop.f32.mrf.mxu0
    %v1140 = vadd.f32 %v1024, %v1139
    %v1141 = vpop.f32.mrf.mxu0
    %v1142 = vadd.f32 %v1028, %v1141
    %1143 = vmatprep.mubr.f32.mxu0 0.0
    %1144 = vmatmul.mubr.f32.gmra.mxu0 %v869
    %v1145 = vpop.f32.mrf.mxu0
    %v1146 = vadd.f32 %v1024, %v1145
    %v1147 = vpop.f32.mrf.mxu0
    %v1148 = vadd.f32 %v1028, %v1147
    %1149 = vmatprep.mubr.f32.mxu0 0.0
    %1150 = vmatmul.mubr.f32.gmra.mxu0 %v870
    %v1151 = vpop.f32.mrf.mxu0
    %v1152 = vadd.f32 %v1024, %v1151
    %v1153 = vpop.f32.mrf.mxu0
    %v1154 = vadd.f32 %v1028, %v1153
    %1155 = vmatprep.mubr.f32.mxu0 0.0
    %1156 = vmatmul.mubr.f32.gmra.mxu0 %v871
    %v1157 = vpop.f32.mrf.mxu0
    %v1158 = vadd.f32 %v1024, %v1157
    %v1159 = vpop.f32.mrf.mxu0
    %v1160 = vadd.f32 %v1028, %v1159
    %1161 = vmatprep.mubr.f32.mxu0 0.0
    %1162 = vmatmul.mubr.f32.gmra.mxu0 %v872
    %v1163 = vpop.f32.mrf.mxu0
    %v1164 = vadd.f32 %v1024, %v1163
    %v1165 = vpop.f32.mrf.mxu0
    %v1166 = vadd.f32 %v1028, %v1165
    %1167 = vmatprep.mubr.f32.mxu0 0.0
    %1168 = vmatmul.mubr.f32.gmra.mxu0 %v873
    %v1169 = vpop.f32.mrf.mxu0
    %v1170 = vadd.f32 %v1024, %v1169
    %v1171 = vpop.f32.mrf.mxu0
    %v1172 = vadd.f32 %v1028, %v1171
    %1173 = vmatprep.mubr.f32.mxu0 0.0
    %1174 = vmatmul.mubr.f32.gmra.mxu0 %v874
    %v1175 = vpop.f32.mrf.mxu0
    %v1176 = vadd.f32 %v1024, %v1175
    %v1177 = vpop.f32.mrf.mxu0
    %v1178 = vadd.f32 %v1028, %v1177
    %1179 = vmatprep.mubr.f32.mxu0 0.0
    %1180 = vmatmul.mubr.f32.gmra.mxu0 %v875
    %v1181 = vpop.f32.mrf.mxu0
    %v1182 = vadd.f32 %v1024, %v1181
    %v1183 = vpop.f32.mrf.mxu0
    %v1184 = vadd.f32 %v1028, %v1183
    %1185 = vmatprep.mubr.f32.mxu0 0.0
    %1186 = vmatmul.mubr.f32.gmra.mxu0 %v876
    %v1187 = vpop.f32.mrf.mxu0
    %v1188 = vadd.f32 %v1024, %v1187
    %v1189 = vpop.f32.mrf.mxu0
    %v1190 = vadd.f32 %v1028, %v1189
    %1191 = vmatprep.mubr.f32.mxu0 0.0
    %1192 = vmatmul.mubr.f32.gmra.mxu0 %v877
    %v1193 = vpop.f32.mrf.mxu0
    %v1194 = vadd.f32 %v1024, %v1193
    %v1195 = vpop.f32.mrf.mxu0
    %v1196 = vadd.f32 %v1028, %v1195
    %1197 = vmatprep.mubr.f32.mxu0 0.0
    %1198 = vmatmul.mubr.f32.gmra.mxu0 %v878
    %v1199 = vpop.f32.mrf.mxu0
    %v1200 = vadd.f32 %v1024, %v1199
    %v1201 = vpop.f32.mrf.mxu0
    %v1202 = vadd.f32 %v1028, %v1201
    %1203 = vmatprep.mubr.f32.mxu0 0.0
    %1204 = vmatmul.mubr.f32.gmra.mxu0 %v879
    %v1205 = vpop.f32.mrf.mxu0
    %v1206 = vadd.f32 %v1024, %v1205
    %v1207 = vpop.f32.mrf.mxu0
    %v1208 = vadd.f32 %v1028, %v1207
    %1209 = vmatprep.mubr.f32.mxu0 0.0
    %1210 = vmatmul.mubr.f32.gmra.mxu0 %v880
    %v1211 = vpop.f32.mrf.mxu0
    %v1212 = vadd.f32 %v1024, %v1211
    %v1213 = vpop.f32.mrf.mxu0
    %v1214 = vadd.f32 %v1028, %v1213
    %1215 = vmatprep.mubr.f32.mxu0 0.0
    %1216 = vmatmul.mubr.f32.gmra.mxu0 %v881
    %v1217 = vpop.f32.mrf.mxu0
    %v1218 = vadd.f32 %v1024, %v1217
    %v1219 = vpop.f32.mrf.mxu0
    %v1220 = vadd.f32 %v1028, %v1219
    %1221 = vmatprep.mubr.f32.mxu0 0.0
    %1222 = vmatmul.mubr.f32.gmra.mxu0 %v882
    %v1223 = vpop.f32.mrf.mxu0
    %v1224 = vadd.f32 %v1024, %v1223
    %v1225 = vpop.f32.mrf.mxu0
    %v1226 = vadd.f32 %v1028, %v1225
    %1227 = vmatprep.mubr.f32.mxu0 0.0
    %1228 = vmatmul.mubr.f32.gmra.mxu0 %v883
    %v1229 = vpop.f32.mrf.mxu0
    %v1230 = vadd.f32 %v1024, %v1229
    %v1231 = vpop.f32.mrf.mxu0
    %v1232 = vadd.f32 %v1028, %v1231
    %1233 = vmatprep.mubr.f32.mxu0 0.0
    %1234 = vmatmul.mubr.f32.gmra.mxu0 %v884
    %v1235 = vpop.f32.mrf.mxu0
    %v1236 = vadd.f32 %v1024, %v1235
    %v1237 = vpop.f32.mrf.mxu0
    %v1238 = vadd.f32 %v1028, %v1237
    %1239 = vmatprep.mubr.f32.mxu0 0.0
    %1240 = vmatmul.mubr.f32.gmra.mxu0 %v885
    %v1241 = vpop.f32.mrf.mxu0
    %v1242 = vadd.f32 %v1024, %v1241
    %v1243 = vpop.f32.mrf.mxu0
    %v1244 = vadd.f32 %v1028, %v1243
    %1245 = vmatprep.mubr.f32.mxu0 0.0
    %1246 = vmatmul.mubr.f32.gmra.mxu0 %v886
    %v1247 = vpop.f32.mrf.mxu0
    %v1248 = vadd.f32 %v1024, %v1247
    %v1249 = vpop.f32.mrf.mxu0
    %v1250 = vadd.f32 %v1028, %v1249
    %1251 = vmatprep.mubr.f32.mxu0 0.0
    %1252 = vmatmul.mubr.f32.gmra.mxu0 %v887
    %v1253 = vpop.f32.mrf.mxu0
    %v1254 = vadd.f32 %v1024, %v1253
    %v1255 = vpop.f32.mrf.mxu0
    %v1256 = vadd.f32 %v1028, %v1255
    %1257 = vmatprep.mubr.f32.mxu0 0.0
    %1258 = vmatmul.mubr.f32.gmra.mxu0 %v888
    %v1259 = vpop.f32.mrf.mxu0
    %v1260 = vadd.f32 %v1024, %v1259
    %v1261 = vpop.f32.mrf.mxu0
    %v1262 = vadd.f32 %v1028, %v1261
    %1263 = vmatprep.mubr.f32.mxu0 0.0
    %1264 = vmatmul.mubr.f32.gmra.mxu0 %v889
    %v1265 = vpop.f32.mrf.mxu0
    %v1266 = vadd.f32 %v1024, %v1265
    %v1267 = vpop.f32.mrf.mxu0
    %v1268 = vadd.f32 %v1028, %v1267
    %1269 = vmatprep.mubr.f32.mxu0 0.0
    %1270 = vmatmul.mubr.f32.gmra.mxu0 %v890
    %v1271 = vpop.f32.mrf.mxu0
    %v1272 = vadd.f32 %v1024, %v1271
    %v1273 = vpop.f32.mrf.mxu0
    %v1274 = vadd.f32 %v1028, %v1273
    %1275 = vdwg.mxu0
    %1276 = vmatprep.subr.mxu0 %v1014
    %1277 = vmatpush1.msra.mxu0 %v1013
    %1278 = vmatprep.subr.mxu0 %v1006
    %1279 = vmatpush1.msra.mxu0 %v1005
    %1280 = vmatprep.subr.mxu0 %v998
    %1281 = vmatpush1.msra.mxu0 %v997
    %1282 = vmatprep.subr.mxu0 %v990
    %1283 = vmatpush1.msra.mxu0 %v989
    %1284 = vmatprep.subr.mxu0 %v982
    %1285 = vmatpush1.msra.mxu0 %v981
    %1286 = vmatprep.subr.mxu0 %v974
    %1287 = vmatpush1.msra.mxu0 %v973
    %1288 = vmatprep.subr.mxu0 %v966
    %1289 = vmatpush1.msra.mxu0 %v965
    %1290 = vmatprep.subr.mxu0 %v958
    %1291 = vmatpush1.msra.mxu0 %v957
    %1292 = vmatprep.subr.mxu0 %v950
    %1293 = vmatpush1.msra.mxu0 %v949
    %1294 = vmatprep.subr.mxu0 %v942
    %1295 = vmatpush1.msra.mxu0 %v941
    %1296 = vmatprep.subr.mxu0 %v934
    %1297 = vmatpush1.msra.mxu0 %v933
    %1298 = vmatprep.subr.mxu0 %v926
    %1299 = vmatpush1.msra.mxu0 %v925
    %1300 = vmatprep.subr.mxu0 %v918
    %1301 = vmatpush1.msra.mxu0 %v917
    %1302 = vmatprep.subr.mxu0 %v910
    %1303 = vmatpush1.msra.mxu0 %v909
    %1304 = vmatprep.subr.mxu0 %v902
    %1305 = vmatpush1.msra.mxu0 %v901
    %1306 = vmatprep.subr.mxu0 %v894
    %1307 = vmatpush1.msra.mxu0 %v893
    %1308 = vmatprep.subr.mxu0 0.0
    %1309 = vmatpush2.msra.mxu0 0.0
    %1310 = vmatprep.subr.mxu0 0.0
    %1311 = vmatpush2.msra.mxu0 0.0
    %1312 = vmatprep.subr.mxu0 0.0
    %1313 = vmatpush2.msra.mxu0 0.0
    %1314 = vmatprep.subr.mxu0 0.0
    %1315 = vmatpush2.msra.mxu0 0.0
    %1316 = vmatprep.subr.mxu0 0.0
    %1317 = vmatpush2.msra.mxu0 0.0
    %1318 = vmatprep.subr.mxu0 0.0
    %1319 = vmatpush2.msra.mxu0 0.0
    %1320 = vmatprep.subr.mxu0 0.0
    %1321 = vmatpush2.msra.mxu0 0.0
    %1322 = vmatprep.subr.mxu0 0.0
    %1323 = vmatpush2.msra.mxu0 0.0
    %1324 = vmatprep.subr.mxu0 0.0
    %1325 = vmatpush2.msra.mxu0 0.0
    %1326 = vmatprep.subr.mxu0 0.0
    %1327 = vmatpush2.msra.mxu0 0.0
    %1328 = vmatprep.subr.mxu0 0.0
    %1329 = vmatpush2.msra.mxu0 0.0
    %1330 = vmatprep.subr.mxu0 0.0
    %1331 = vmatpush2.msra.mxu0 0.0
    %1332 = vmatprep.subr.mxu0 0.0
    %1333 = vmatpush2.msra.mxu0 0.0
    %1334 = vmatprep.subr.mxu0 0.0
    %1335 = vmatpush2.msra.mxu0 0.0
    %1336 = vmatprep.subr.mxu0 0.0
    %1337 = vmatpush2.msra.mxu0 0.0
    %1338 = vmatprep.subr.mxu0 0.0
    %1339 = vmatpush2.msra.mxu0 0.0
    %1340 = vmatprep.mubr.f32.mxu0 0.0
    %1341 = vmatmul.mubr.f32.gmra.mxu0 %v866
    %v1342 = vpop.f32.mrf.mxu0
    %v1343 = vadd.f32 %v1032, %v1342
    %v1344 = vpop.f32.mrf.mxu0
    %v1345 = vadd.f32 %v1036, %v1344
    %1346 = vmatprep.mubr.f32.mxu0 0.0
    %1347 = vmatmul.mubr.f32.gmra.mxu0 %v867
    %v1348 = vpop.f32.mrf.mxu0
    %v1349 = vadd.f32 %v1032, %v1348
    %v1350 = vpop.f32.mrf.mxu0
    %v1351 = vadd.f32 %v1036, %v1350
    %1352 = vmatprep.mubr.f32.mxu0 0.0
    %1353 = vmatmul.mubr.f32.gmra.mxu0 %v868
    %v1354 = vpop.f32.mrf.mxu0
    %v1355 = vadd.f32 %v1032, %v1354
    %v1356 = vpop.f32.mrf.mxu0
    %v1357 = vadd.f32 %v1036, %v1356
    %1358 = vmatprep.mubr.f32.mxu0 0.0
    %1359 = vmatmul.mubr.f32.gmra.mxu0 %v869
    %v1360 = vpop.f32.mrf.mxu0
    %v1361 = vadd.f32 %v1032, %v1360
    %v1362 = vpop.f32.mrf.mxu0
    %v1363 = vadd.f32 %v1036, %v1362
    %1364 = vmatprep.mubr.f32.mxu0 0.0
    %1365 = vmatmul.mubr.f32.gmra.mxu0 %v870
    %v1366 = vpop.f32.mrf.mxu0
    %v1367 = vadd.f32 %v1032, %v1366
    %v1368 = vpop.f32.mrf.mxu0
    %v1369 = vadd.f32 %v1036, %v1368
    %1370 = vmatprep.mubr.f32.mxu0 0.0
    %1371 = vmatmul.mubr.f32.gmra.mxu0 %v871
    %v1372 = vpop.f32.mrf.mxu0
    %v1373 = vadd.f32 %v1032, %v1372
    %v1374 = vpop.f32.mrf.mxu0
    %v1375 = vadd.f32 %v1036, %v1374
    %1376 = vmatprep.mubr.f32.mxu0 0.0
    %1377 = vmatmul.mubr.f32.gmra.mxu0 %v872
    %v1378 = vpop.f32.mrf.mxu0
    %v1379 = vadd.f32 %v1032, %v1378
    %v1380 = vpop.f32.mrf.mxu0
    %v1381 = vadd.f32 %v1036, %v1380
    %1382 = vmatprep.mubr.f32.mxu0 0.0
    %1383 = vmatmul.mubr.f32.gmra.mxu0 %v873
    %v1384 = vpop.f32.mrf.mxu0
    %v1385 = vadd.f32 %v1032, %v1384
    %v1386 = vpop.f32.mrf.mxu0
    %v1387 = vadd.f32 %v1036, %v1386
    %1388 = vmatprep.mubr.f32.mxu0 0.0
    %1389 = vmatmul.mubr.f32.gmra.mxu0 %v874
    %v1390 = vpop.f32.mrf.mxu0
    %v1391 = vadd.f32 %v1032, %v1390
    %v1392 = vpop.f32.mrf.mxu0
    %v1393 = vadd.f32 %v1036, %v1392
    %1394 = vmatprep.mubr.f32.mxu0 0.0
    %1395 = vmatmul.mubr.f32.gmra.mxu0 %v875
    %v1396 = vpop.f32.mrf.mxu0
    %v1397 = vadd.f32 %v1032, %v1396
    %v1398 = vpop.f32.mrf.mxu0
    %v1399 = vadd.f32 %v1036, %v1398
    %1400 = vmatprep.mubr.f32.mxu0 0.0
    %1401 = vmatmul.mubr.f32.gmra.mxu0 %v876
    %v1402 = vpop.f32.mrf.mxu0
    %v1403 = vadd.f32 %v1032, %v1402
    %v1404 = vpop.f32.mrf.mxu0
    %v1405 = vadd.f32 %v1036, %v1404
    %1406 = vmatprep.mubr.f32.mxu0 0.0
    %1407 = vmatmul.mubr.f32.gmra.mxu0 %v877
    %v1408 = vpop.f32.mrf.mxu0
    %v1409 = vadd.f32 %v1032, %v1408
    %v1410 = vpop.f32.mrf.mxu0
    %v1411 = vadd.f32 %v1036, %v1410
    %1412 = vmatprep.mubr.f32.mxu0 0.0
    %1413 = vmatmul.mubr.f32.gmra.mxu0 %v878
    %v1414 = vpop.f32.mrf.mxu0
    %v1415 = vadd.f32 %v1032, %v1414
    %v1416 = vpop.f32.mrf.mxu0
    %v1417 = vadd.f32 %v1036, %v1416
    %1418 = vmatprep.mubr.f32.mxu0 0.0
    %1419 = vmatmul.mubr.f32.gmra.mxu0 %v879
    %v1420 = vpop.f32.mrf.mxu0
    %v1421 = vadd.f32 %v1032, %v1420
    %v1422 = vpop.f32.mrf.mxu0
    %v1423 = vadd.f32 %v1036, %v1422
    %1424 = vmatprep.mubr.f32.mxu0 0.0
    %1425 = vmatmul.mubr.f32.gmra.mxu0 %v880
    %v1426 = vpop.f32.mrf.mxu0
    %v1427 = vadd.f32 %v1032, %v1426
    %v1428 = vpop.f32.mrf.mxu0
    %v1429 = vadd.f32 %v1036, %v1428
    %1430 = vmatprep.mubr.f32.mxu0 0.0
    %1431 = vmatmul.mubr.f32.gmra.mxu0 %v881
    %v1432 = vpop.f32.mrf.mxu0
    %v1433 = vadd.f32 %v1032, %v1432
    %v1434 = vpop.f32.mrf.mxu0
    %v1435 = vadd.f32 %v1036, %v1434
    %1436 = vmatprep.mubr.f32.mxu0 0.0
    %1437 = vmatmul.mubr.f32.gmra.mxu0 %v882
    %v1438 = vpop.f32.mrf.mxu0
    %v1439 = vadd.f32 %v1032, %v1438
    %v1440 = vpop.f32.mrf.mxu0
    %v1441 = vadd.f32 %v1036, %v1440
    %1442 = vmatprep.mubr.f32.mxu0 0.0
    %1443 = vmatmul.mubr.f32.gmra.mxu0 %v883
    %v1444 = vpop.f32.mrf.mxu0
    %v1445 = vadd.f32 %v1032, %v1444
    %v1446 = vpop.f32.mrf.mxu0
    %v1447 = vadd.f32 %v1036, %v1446
    %1448 = vmatprep.mubr.f32.mxu0 0.0
    %1449 = vmatmul.mubr.f32.gmra.mxu0 %v884
    %v1450 = vpop.f32.mrf.mxu0
    %v1451 = vadd.f32 %v1032, %v1450
    %v1452 = vpop.f32.mrf.mxu0
    %v1453 = vadd.f32 %v1036, %v1452
    %1454 = vmatprep.mubr.f32.mxu0 0.0
    %1455 = vmatmul.mubr.f32.gmra.mxu0 %v885
    %v1456 = vpop.f32.mrf.mxu0
    %v1457 = vadd.f32 %v1032, %v1456
    %v1458 = vpop.f32.mrf.mxu0
    %v1459 = vadd.f32 %v1036, %v1458
    %1460 = vmatprep.mubr.f32.mxu0 0.0
    %1461 = vmatmul.mubr.f32.gmra.mxu0 %v886
    %v1462 = vpop.f32.mrf.mxu0
    %v1463 = vadd.f32 %v1032, %v1462
    %v1464 = vpop.f32.mrf.mxu0
    %v1465 = vadd.f32 %v1036, %v1464
    %1466 = vmatprep.mubr.f32.mxu0 0.0
    %1467 = vmatmul.mubr.f32.gmra.mxu0 %v887
    %v1468 = vpop.f32.mrf.mxu0
    %v1469 = vadd.f32 %v1032, %v1468
    %v1470 = vpop.f32.mrf.mxu0
    %v1471 = vadd.f32 %v1036, %v1470
    %1472 = vmatprep.mubr.f32.mxu0 0.0
    %1473 = vmatmul.mubr.f32.gmra.mxu0 %v888
    %v1474 = vpop.f32.mrf.mxu0
    %v1475 = vadd.f32 %v1032, %v1474
    %v1476 = vpop.f32.mrf.mxu0
    %v1477 = vadd.f32 %v1036, %v1476
    %1478 = vmatprep.mubr.f32.mxu0 0.0
    %1479 = vmatmul.mubr.f32.gmra.mxu0 %v889
    %v1480 = vpop.f32.mrf.mxu0
    %v1481 = vadd.f32 %v1032, %v1480
    %v1482 = vpop.f32.mrf.mxu0
    %v1483 = vadd.f32 %v1036, %v1482
    %1484 = vmatprep.mubr.f32.mxu0 0.0
    %1485 = vmatmul.mubr.f32.gmra.mxu0 %v890
    %v1486 = vpop.f32.mrf.mxu0
    %v1487 = vadd.f32 %v1032, %v1486
    %v1488 = vpop.f32.mrf.mxu0
    %v1489 = vadd.f32 %v1036, %v1488
    %1490 = vdwg.mxu0
    %1491 = vmatprep.subr.mxu0 %v1016
    %1492 = vmatpush1.msra.mxu0 %v1015
    %1493 = vmatprep.subr.mxu0 %v1008
    %1494 = vmatpush1.msra.mxu0 %v1007
    %1495 = vmatprep.subr.mxu0 %v1000
    %1496 = vmatpush1.msra.mxu0 %v999
    %1497 = vmatprep.subr.mxu0 %v992
    %1498 = vmatpush1.msra.mxu0 %v991
    %1499 = vmatprep.subr.mxu0 %v984
    %1500 = vmatpush1.msra.mxu0 %v983
    %1501 = vmatprep.subr.mxu0 %v976
    %1502 = vmatpush1.msra.mxu0 %v975
    %1503 = vmatprep.subr.mxu0 %v968
    %1504 = vmatpush1.msra.mxu0 %v967
    %1505 = vmatprep.subr.mxu0 %v960
    %1506 = vmatpush1.msra.mxu0 %v959
    %1507 = vmatprep.subr.mxu0 %v952
    %1508 = vmatpush1.msra.mxu0 %v951
    %1509 = vmatprep.subr.mxu0 %v944
    %1510 = vmatpush1.msra.mxu0 %v943
    %1511 = vmatprep.subr.mxu0 %v936
    %1512 = vmatpush1.msra.mxu0 %v935
    %1513 = vmatprep.subr.mxu0 %v928
    %1514 = vmatpush1.msra.mxu0 %v927
    %1515 = vmatprep.subr.mxu0 %v920
    %1516 = vmatpush1.msra.mxu0 %v919
    %1517 = vmatprep.subr.mxu0 %v912
    %1518 = vmatpush1.msra.mxu0 %v911
    %1519 = vmatprep.subr.mxu0 %v904
    %1520 = vmatpush1.msra.mxu0 %v903
    %1521 = vmatprep.subr.mxu0 %v896
    %1522 = vmatpush1.msra.mxu0 %v895
    %1523 = vmatprep.subr.mxu0 0.0
    %1524 = vmatpush2.msra.mxu0 0.0
    %1525 = vmatprep.subr.mxu0 0.0
    %1526 = vmatpush2.msra.mxu0 0.0
    %1527 = vmatprep.subr.mxu0 0.0
    %1528 = vmatpush2.msra.mxu0 0.0
    %1529 = vmatprep.subr.mxu0 0.0
    %1530 = vmatpush2.msra.mxu0 0.0
    %1531 = vmatprep.subr.mxu0 0.0
    %1532 = vmatpush2.msra.mxu0 0.0
    %1533 = vmatprep.subr.mxu0 0.0
    %1534 = vmatpush2.msra.mxu0 0.0
    %1535 = vmatprep.subr.mxu0 0.0
    %1536 = vmatpush2.msra.mxu0 0.0
    %1537 = vmatprep.subr.mxu0 0.0
    %1538 = vmatpush2.msra.mxu0 0.0
    %1539 = vmatprep.subr.mxu0 0.0
    %1540 = vmatpush2.msra.mxu0 0.0
    %1541 = vmatprep.subr.mxu0 0.0
    %1542 = vmatpush2.msra.mxu0 0.0
    %1543 = vmatprep.subr.mxu0 0.0
    %1544 = vmatpush2.msra.mxu0 0.0
    %1545 = vmatprep.subr.mxu0 0.0
    %1546 = vmatpush2.msra.mxu0 0.0
    %1547 = vmatprep.subr.mxu0 0.0
    %1548 = vmatpush2.msra.mxu0 0.0
    %1549 = vmatprep.subr.mxu0 0.0
    %1550 = vmatpush2.msra.mxu0 0.0
    %1551 = vmatprep.subr.mxu0 0.0
    %1552 = vmatpush2.msra.mxu0 0.0
    %1553 = vmatprep.subr.mxu0 0.0
    %1554 = vmatpush2.msra.mxu0 0.0
    %1555 = vmatprep.mubr.f32.mxu0 0.0
    %1556 = vmatmul.mubr.f32.gmra.mxu0 %v866
    %v1557 = vpop.f32.mrf.mxu0
    %v1558 = vadd.f32 %v1040, %v1557
    %v1559 = vpop.f32.mrf.mxu0
    %v1560 = vadd.f32 %v1044, %v1559
    %1561 = vmatprep.mubr.f32.mxu0 0.0
    %1562 = vmatmul.mubr.f32.gmra.mxu0 %v867
    %v1563 = vpop.f32.mrf.mxu0
    %v1564 = vadd.f32 %v1040, %v1563
    %v1565 = vpop.f32.mrf.mxu0
    %v1566 = vadd.f32 %v1044, %v1565
    %1567 = vmatprep.mubr.f32.mxu0 0.0
    %1568 = vmatmul.mubr.f32.gmra.mxu0 %v868
    %v1569 = vpop.f32.mrf.mxu0
    %v1570 = vadd.f32 %v1040, %v1569
    %v1571 = vpop.f32.mrf.mxu0
    %v1572 = vadd.f32 %v1044, %v1571
    %1573 = vmatprep.mubr.f32.mxu0 0.0
    %1574 = vmatmul.mubr.f32.gmra.mxu0 %v869
    %v1575 = vpop.f32.mrf.mxu0
    %v1576 = vadd.f32 %v1040, %v1575
    %v1577 = vpop.f32.mrf.mxu0
    %v1578 = vadd.f32 %v1044, %v1577
    %1579 = vmatprep.mubr.f32.mxu0 0.0
    %1580 = vmatmul.mubr.f32.gmra.mxu0 %v870
    %v1581 = vpop.f32.mrf.mxu0
    %v1582 = vadd.f32 %v1040, %v1581
    %v1583 = vpop.f32.mrf.mxu0
    %v1584 = vadd.f32 %v1044, %v1583
    %1585 = vmatprep.mubr.f32.mxu0 0.0
    %1586 = vmatmul.mubr.f32.gmra.mxu0 %v871
    %v1587 = vpop.f32.mrf.mxu0
    %v1588 = vadd.f32 %v1040, %v1587
    %v1589 = vpop.f32.mrf.mxu0
    %v1590 = vadd.f32 %v1044, %v1589
    %1591 = vmatprep.mubr.f32.mxu0 0.0
    %1592 = vmatmul.mubr.f32.gmra.mxu0 %v872
    %v1593 = vpop.f32.mrf.mxu0
    %v1594 = vadd.f32 %v1040, %v1593
    %v1595 = vpop.f32.mrf.mxu0
    %v1596 = vadd.f32 %v1044, %v1595
    %1597 = vmatprep.mubr.f32.mxu0 0.0
    %1598 = vmatmul.mubr.f32.gmra.mxu0 %v873
    %v1599 = vpop.f32.mrf.mxu0
    %v1600 = vadd.f32 %v1040, %v1599
    %v1601 = vpop.f32.mrf.mxu0
    %v1602 = vadd.f32 %v1044, %v1601
    %1603 = vmatprep.mubr.f32.mxu0 0.0
    %1604 = vmatmul.mubr.f32.gmra.mxu0 %v874
    %v1605 = vpop.f32.mrf.mxu0
    %v1606 = vadd.f32 %v1040, %v1605
    %v1607 = vpop.f32.mrf.mxu0
    %v1608 = vadd.f32 %v1044, %v1607
    %1609 = vmatprep.mubr.f32.mxu0 0.0
    %1610 = vmatmul.mubr.f32.gmra.mxu0 %v875
    %v1611 = vpop.f32.mrf.mxu0
    %v1612 = vadd.f32 %v1040, %v1611
    %v1613 = vpop.f32.mrf.mxu0
    %v1614 = vadd.f32 %v1044, %v1613
    %1615 = vmatprep.mubr.f32.mxu0 0.0
    %1616 = vmatmul.mubr.f32.gmra.mxu0 %v876
    %v1617 = vpop.f32.mrf.mxu0
    %v1618 = vadd.f32 %v1040, %v1617
    %v1619 = vpop.f32.mrf.mxu0
    %v1620 = vadd.f32 %v1044, %v1619
    %1621 = vmatprep.mubr.f32.mxu0 0.0
    %1622 = vmatmul.mubr.f32.gmra.mxu0 %v877
    %v1623 = vpop.f32.mrf.mxu0
    %v1624 = vadd.f32 %v1040, %v1623
    %v1625 = vpop.f32.mrf.mxu0
    %v1626 = vadd.f32 %v1044, %v1625
    %1627 = vmatprep.mubr.f32.mxu0 0.0
    %1628 = vmatmul.mubr.f32.gmra.mxu0 %v878
    %v1629 = vpop.f32.mrf.mxu0
    %v1630 = vadd.f32 %v1040, %v1629
    %v1631 = vpop.f32.mrf.mxu0
    %v1632 = vadd.f32 %v1044, %v1631
    %1633 = vmatprep.mubr.f32.mxu0 0.0
    %1634 = vmatmul.mubr.f32.gmra.mxu0 %v879
    %v1635 = vpop.f32.mrf.mxu0
    %v1636 = vadd.f32 %v1040, %v1635
    %v1637 = vpop.f32.mrf.mxu0
    %v1638 = vadd.f32 %v1044, %v1637
    %1639 = vmatprep.mubr.f32.mxu0 0.0
    %1640 = vmatmul.mubr.f32.gmra.mxu0 %v880
    %v1641 = vpop.f32.mrf.mxu0
    %v1642 = vadd.f32 %v1040, %v1641
    %v1643 = vpop.f32.mrf.mxu0
    %v1644 = vadd.f32 %v1044, %v1643
    %1645 = vmatprep.mubr.f32.mxu0 0.0
    %1646 = vmatmul.mubr.f32.gmra.mxu0 %v881
    %v1647 = vpop.f32.mrf.mxu0
    %v1648 = vadd.f32 %v1040, %v1647
    %v1649 = vpop.f32.mrf.mxu0
    %v1650 = vadd.f32 %v1044, %v1649
    %1651 = vmatprep.mubr.f32.mxu0 0.0
    %1652 = vmatmul.mubr.f32.gmra.mxu0 %v882
    %v1653 = vpop.f32.mrf.mxu0
    %v1654 = vadd.f32 %v1040, %v1653
    %v1655 = vpop.f32.mrf.mxu0
    %v1656 = vadd.f32 %v1044, %v1655
    %1657 = vmatprep.mubr.f32.mxu0 0.0
    %1658 = vmatmul.mubr.f32.gmra.mxu0 %v883
    %v1659 = vpop.f32.mrf.mxu0
    %v1660 = vadd.f32 %v1040, %v1659
    %v1661 = vpop.f32.mrf.mxu0
    %v1662 = vadd.f32 %v1044, %v1661
    %1663 = vmatprep.mubr.f32.mxu0 0.0
    %1664 = vmatmul.mubr.f32.gmra.mxu0 %v884
    %v1665 = vpop.f32.mrf.mxu0
    %v1666 = vadd.f32 %v1040, %v1665
    %v1667 = vpop.f32.mrf.mxu0
    %v1668 = vadd.f32 %v1044, %v1667
    %1669 = vmatprep.mubr.f32.mxu0 0.0
    %1670 = vmatmul.mubr.f32.gmra.mxu0 %v885
    %v1671 = vpop.f32.mrf.mxu0
    %v1672 = vadd.f32 %v1040, %v1671
    %v1673 = vpop.f32.mrf.mxu0
    %v1674 = vadd.f32 %v1044, %v1673
    %1675 = vmatprep.mubr.f32.mxu0 0.0
    %1676 = vmatmul.mubr.f32.gmra.mxu0 %v886
    %v1677 = vpop.f32.mrf.mxu0
    %v1678 = vadd.f32 %v1040, %v1677
    %v1679 = vpop.f32.mrf.mxu0
    %v1680 = vadd.f32 %v1044, %v1679
    %1681 = vmatprep.mubr.f32.mxu0 0.0
    %1682 = vmatmul.mubr.f32.gmra.mxu0 %v887
    %v1683 = vpop.f32.mrf.mxu0
    %v1684 = vadd.f32 %v1040, %v1683
    %v1685 = vpop.f32.mrf.mxu0
    %v1686 = vadd.f32 %v1044, %v1685
    %1687 = vmatprep.mubr.f32.mxu0 0.0
    %1688 = vmatmul.mubr.f32.gmra.mxu0 %v888
    %v1689 = vpop.f32.mrf.mxu0
    %v1690 = vadd.f32 %v1040, %v1689
    %v1691 = vpop.f32.mrf.mxu0
    %v1692 = vadd.f32 %v1044, %v1691
    %1693 = vmatprep.mubr.f32.mxu0 0.0
    %1694 = vmatmul.mubr.f32.gmra.mxu0 %v889
    %v1695 = vpop.f32.mrf.mxu0
    %v1696 = vadd.f32 %v1040, %v1695
    %v1697 = vpop.f32.mrf.mxu0
    %v1698 = vadd.f32 %v1044, %v1697
    %1699 = vmatprep.mubr.f32.mxu0 0.0
    %1700 = vmatmul.mubr.f32.gmra.mxu0 %v890
    %v1701 = vpop.f32.mrf.mxu0
    %v1702 = vadd.f32 %v1040, %v1701
    %v1703 = vpop.f32.mrf.mxu0
    %v1704 = vadd.f32 %v1044, %v1703
    %1705 = vdwg.mxu0
    %1706 = vmatprep.subr.mxu0 %v1018
    %1707 = vmatpush1.msra.mxu0 %v1017
    %1708 = vmatprep.subr.mxu0 %v1010
    %1709 = vmatpush1.msra.mxu0 %v1009
    %1710 = vmatprep.subr.mxu0 %v1002
    %1711 = vmatpush1.msra.mxu0 %v1001
    %1712 = vmatprep.subr.mxu0 %v994
    %1713 = vmatpush1.msra.mxu0 %v993
    %1714 = vmatprep.subr.mxu0 %v986
    %1715 = vmatpush1.msra.mxu0 %v985
    %1716 = vmatprep.subr.mxu0 %v978
    %1717 = vmatpush1.msra.mxu0 %v977
    %1718 = vmatprep.subr.mxu0 %v970
    %1719 = vmatpush1.msra.mxu0 %v969
    %1720 = vmatprep.subr.mxu0 %v962
    %1721 = vmatpush1.msra.mxu0 %v961
    %1722 = vmatprep.subr.mxu0 %v954
    %1723 = vmatpush1.msra.mxu0 %v953
    %1724 = vmatprep.subr.mxu0 %v946
    %1725 = vmatpush1.msra.mxu0 %v945
    %1726 = vmatprep.subr.mxu0 %v938
    %1727 = vmatpush1.msra.mxu0 %v937
    %1728 = vmatprep.subr.mxu0 %v930
    %1729 = vmatpush1.msra.mxu0 %v929
    %1730 = vmatprep.subr.mxu0 %v922
    %1731 = vmatpush1.msra.mxu0 %v921
    %1732 = vmatprep.subr.mxu0 %v914
    %1733 = vmatpush1.msra.mxu0 %v913
    %1734 = vmatprep.subr.mxu0 %v906
    %1735 = vmatpush1.msra.mxu0 %v905
    %1736 = vmatprep.subr.mxu0 %v898
    %1737 = vmatpush1.msra.mxu0 %v897
    %1738 = vmatprep.subr.mxu0 0.0
    %1739 = vmatpush2.msra.mxu0 0.0
    %1740 = vmatprep.subr.mxu0 0.0
    %1741 = vmatpush2.msra.mxu0 0.0
    %1742 = vmatprep.subr.mxu0 0.0
    %1743 = vmatpush2.msra.mxu0 0.0
    %1744 = vmatprep.subr.mxu0 0.0
    %1745 = vmatpush2.msra.mxu0 0.0
    %1746 = vmatprep.subr.mxu0 0.0
    %1747 = vmatpush2.msra.mxu0 0.0
    %1748 = vmatprep.subr.mxu0 0.0
    %1749 = vmatpush2.msra.mxu0 0.0
    %1750 = vmatprep.subr.mxu0 0.0
    %1751 = vmatpush2.msra.mxu0 0.0
    %1752 = vmatprep.subr.mxu0 0.0
    %1753 = vmatpush2.msra.mxu0 0.0
    %1754 = vmatprep.subr.mxu0 0.0
    %1755 = vmatpush2.msra.mxu0 0.0
    %1756 = vmatprep.subr.mxu0 0.0
    %1757 = vmatpush2.msra.mxu0 0.0
    %1758 = vmatprep.subr.mxu0 0.0
    %1759 = vmatpush2.msra.mxu0 0.0
    %1760 = vmatprep.subr.mxu0 0.0
    %1761 = vmatpush2.msra.mxu0 0.0
    %1762 = vmatprep.subr.mxu0 0.0
    %1763 = vmatpush2.msra.mxu0 0.0
    %1764 = vmatprep.subr.mxu0 0.0
    %1765 = vmatpush2.msra.mxu0 0.0
    %1766 = vmatprep.subr.mxu0 0.0
    %1767 = vmatpush2.msra.mxu0 0.0
    %1768 = vmatprep.subr.mxu0 0.0
    %1769 = vmatpush2.msra.mxu0 0.0
    %1770 = vmatprep.mubr.f32.mxu0 0.0
    %1771 = vmatmul.mubr.f32.gmra.mxu0 %v866
    %v1772 = vpop.f32.mrf.mxu0
    %v1773 = vadd.f32 %v1048, %v1772
    %v1774 = vpop.f32.mrf.mxu0
    %v1775 = vadd.f32 %v1052, %v1774
    %1776 = vmatprep.mubr.f32.mxu0 0.0
    %1777 = vmatmul.mubr.f32.gmra.mxu0 %v867
    %v1778 = vpop.f32.mrf.mxu0
    %v1779 = vadd.f32 %v1048, %v1778
    %v1780 = vpop.f32.mrf.mxu0
    %v1781 = vadd.f32 %v1052, %v1780
    %1782 = vmatprep.mubr.f32.mxu0 0.0
    %1783 = vmatmul.mubr.f32.gmra.mxu0 %v868
    %v1784 = vpop.f32.mrf.mxu0
    %v1785 = vadd.f32 %v1048, %v1784
    %v1786 = vpop.f32.mrf.mxu0
    %v1787 = vadd.f32 %v1052, %v1786
    %1788 = vmatprep.mubr.f32.mxu0 0.0
    %1789 = vmatmul.mubr.f32.gmra.mxu0 %v869
    %v1790 = vpop.f32.mrf.mxu0
    %v1791 = vadd.f32 %v1048, %v1790
    %v1792 = vpop.f32.mrf.mxu0
    %v1793 = vadd.f32 %v1052, %v1792
    %1794 = vmatprep.mubr.f32.mxu0 0.0
    %1795 = vmatmul.mubr.f32.gmra.mxu0 %v870
    %v1796 = vpop.f32.mrf.mxu0
    %v1797 = vadd.f32 %v1048, %v1796
    %v1798 = vpop.f32.mrf.mxu0
    %v1799 = vadd.f32 %v1052, %v1798
    %1800 = vmatprep.mubr.f32.mxu0 0.0
    %1801 = vmatmul.mubr.f32.gmra.mxu0 %v871
    %v1802 = vpop.f32.mrf.mxu0
    %v1803 = vadd.f32 %v1048, %v1802
    %v1804 = vpop.f32.mrf.mxu0
    %v1805 = vadd.f32 %v1052, %v1804
    %1806 = vmatprep.mubr.f32.mxu0 0.0
    %1807 = vmatmul.mubr.f32.gmra.mxu0 %v872
    %v1808 = vpop.f32.mrf.mxu0
    %v1809 = vadd.f32 %v1048, %v1808
    %v1810 = vpop.f32.mrf.mxu0
    %v1811 = vadd.f32 %v1052, %v1810
    %1812 = vmatprep.mubr.f32.mxu0 0.0
    %1813 = vmatmul.mubr.f32.gmra.mxu0 %v873
    %v1814 = vpop.f32.mrf.mxu0
    %v1815 = vadd.f32 %v1048, %v1814
    %v1816 = vpop.f32.mrf.mxu0
    %v1817 = vadd.f32 %v1052, %v1816
    %1818 = vmatprep.mubr.f32.mxu0 0.0
    %1819 = vmatmul.mubr.f32.gmra.mxu0 %v874
    %v1820 = vpop.f32.mrf.mxu0
    %v1821 = vadd.f32 %v1048, %v1820
    %v1822 = vpop.f32.mrf.mxu0
    %v1823 = vadd.f32 %v1052, %v1822
    %1824 = vmatprep.mubr.f32.mxu0 0.0
    %1825 = vmatmul.mubr.f32.gmra.mxu0 %v875
    %v1826 = vpop.f32.mrf.mxu0
    %v1827 = vadd.f32 %v1048, %v1826
    %v1828 = vpop.f32.mrf.mxu0
    %v1829 = vadd.f32 %v1052, %v1828
    %1830 = vmatprep.mubr.f32.mxu0 0.0
    %1831 = vmatmul.mubr.f32.gmra.mxu0 %v876
    %v1832 = vpop.f32.mrf.mxu0
    %v1833 = vadd.f32 %v1048, %v1832
    %v1834 = vpop.f32.mrf.mxu0
    %v1835 = vadd.f32 %v1052, %v1834
    %1836 = vmatprep.mubr.f32.mxu0 0.0
    %1837 = vmatmul.mubr.f32.gmra.mxu0 %v877
    %v1838 = vpop.f32.mrf.mxu0
    %v1839 = vadd.f32 %v1048, %v1838
    %v1840 = vpop.f32.mrf.mxu0
    %v1841 = vadd.f32 %v1052, %v1840
    %1842 = vmatprep.mubr.f32.mxu0 0.0
    %1843 = vmatmul.mubr.f32.gmra.mxu0 %v878
    %v1844 = vpop.f32.mrf.mxu0
    %v1845 = vadd.f32 %v1048, %v1844
    %v1846 = vpop.f32.mrf.mxu0
    %v1847 = vadd.f32 %v1052, %v1846
    %1848 = vmatprep.mubr.f32.mxu0 0.0
    %1849 = vmatmul.mubr.f32.gmra.mxu0 %v879
    %v1850 = vpop.f32.mrf.mxu0
    %v1851 = vadd.f32 %v1048, %v1850
    %v1852 = vpop.f32.mrf.mxu0
    %v1853 = vadd.f32 %v1052, %v1852
    %1854 = vmatprep.mubr.f32.mxu0 0.0
    %1855 = vmatmul.mubr.f32.gmra.mxu0 %v880
    %v1856 = vpop.f32.mrf.mxu0
    %v1857 = vadd.f32 %v1048, %v1856
    %v1858 = vpop.f32.mrf.mxu0
    %v1859 = vadd.f32 %v1052, %v1858
    %1860 = vmatprep.mubr.f32.mxu0 0.0
    %1861 = vmatmul.mubr.f32.gmra.mxu0 %v881
    %v1862 = vpop.f32.mrf.mxu0
    %v1863 = vadd.f32 %v1048, %v1862
    %v1864 = vpop.f32.mrf.mxu0
    %v1865 = vadd.f32 %v1052, %v1864
    %1866 = vmatprep.mubr.f32.mxu0 0.0
    %1867 = vmatmul.mubr.f32.gmra.mxu0 %v882
    %v1868 = vpop.f32.mrf.mxu0
    %v1869 = vadd.f32 %v1048, %v1868
    %v1870 = vpop.f32.mrf.mxu0
    %v1871 = vadd.f32 %v1052, %v1870
    %1872 = vmatprep.mubr.f32.mxu0 0.0
    %1873 = vmatmul.mubr.f32.gmra.mxu0 %v883
    %v1874 = vpop.f32.mrf.mxu0
    %v1875 = vadd.f32 %v1048, %v1874
    %v1876 = vpop.f32.mrf.mxu0
    %v1877 = vadd.f32 %v1052, %v1876
    %1878 = vmatprep.mubr.f32.mxu0 0.0
    %1879 = vmatmul.mubr.f32.gmra.mxu0 %v884
    %v1880 = vpop.f32.mrf.mxu0
    %v1881 = vadd.f32 %v1048, %v1880
    %v1882 = vpop.f32.mrf.mxu0
    %v1883 = vadd.f32 %v1052, %v1882
    %1884 = vmatprep.mubr.f32.mxu0 0.0
    %1885 = vmatmul.mubr.f32.gmra.mxu0 %v885
    %v1886 = vpop.f32.mrf.mxu0
    %v1887 = vadd.f32 %v1048, %v1886
    %v1888 = vpop.f32.mrf.mxu0
    %v1889 = vadd.f32 %v1052, %v1888
    %1890 = vmatprep.mubr.f32.mxu0 0.0
    %1891 = vmatmul.mubr.f32.gmra.mxu0 %v886
    %v1892 = vpop.f32.mrf.mxu0
    %v1893 = vadd.f32 %v1048, %v1892
    %v1894 = vpop.f32.mrf.mxu0
    %v1895 = vadd.f32 %v1052, %v1894
    %1896 = vmatprep.mubr.f32.mxu0 0.0
    %1897 = vmatmul.mubr.f32.gmra.mxu0 %v887
    %v1898 = vpop.f32.mrf.mxu0
    %v1899 = vadd.f32 %v1048, %v1898
    %v1900 = vpop.f32.mrf.mxu0
    %v1901 = vadd.f32 %v1052, %v1900
    %1902 = vmatprep.mubr.f32.mxu0 0.0
    %1903 = vmatmul.mubr.f32.gmra.mxu0 %v888
    %v1904 = vpop.f32.mrf.mxu0
    %v1905 = vadd.f32 %v1048, %v1904
    %v1906 = vpop.f32.mrf.mxu0
    %v1907 = vadd.f32 %v1052, %v1906
    %1908 = vmatprep.mubr.f32.mxu0 0.0
    %1909 = vmatmul.mubr.f32.gmra.mxu0 %v889
    %v1910 = vpop.f32.mrf.mxu0
    %v1911 = vadd.f32 %v1048, %v1910
    %v1912 = vpop.f32.mrf.mxu0
    %v1913 = vadd.f32 %v1052, %v1912
    %1914 = vmatprep.mubr.f32.mxu0 0.0
    %1915 = vmatmul.mubr.f32.gmra.mxu0 %v890
    %v1916 = vpop.f32.mrf.mxu0
    %v1917 = vadd.f32 %v1048, %v1916
    %v1918 = vpop.f32.mrf.mxu0
    %v1919 = vadd.f32 %v1052, %v1918
    %1920 = vdwg.mxu0
    %1921 = vst [vmem:[%s7] sm:$0xff] %v1128
    %1922 = vst [vmem:[%s7 + $0x8] sm:$0xff] %v1130
    %1923 = vst [vmem:[%s7 + $0x10] sm:$0xff] %v1343
    %1924 = vst [vmem:[%s7 + $0x18] sm:$0xff] %v1345
    %1925 = vst [vmem:[%s7 + $0x20] sm:$0xff] %v1558
    %1926 = vst [vmem:[%s7 + $0x28] sm:$0xff] %v1560
    %1927 = vst [vmem:[%s7 + $0x30] sm:$0xff] %v1773
    %1928 = vst [vmem:[%s7 + $0x38] sm:$0xff] %v1775
    %1929 = vst [vmem:[%s7 + $0x40] sm:$0xff] %v1134
    %1930 = vst [vmem:[%s7 + $0x48] sm:$0xff] %v1136
    %1931 = vst [vmem:[%s7 + $0x50] sm:$0xff] %v1349
    %1932 = vst [vmem:[%s7 + $0x58] sm:$0xff] %v1351
    %1933 = vst [vmem:[%s7 + $0x60] sm:$0xff] %v1564
    %1934 = vst [vmem:[%s7 + $0x68] sm:$0xff] %v1566
    %1935 = vst [vmem:[%s7 + $0x70] sm:$0xff] %v1779
    %1936 = vst [vmem:[%s7 + $0x78] sm:$0xff] %v1781
    %1937 = vst [vmem:[%s7 + $0x80] sm:$0xff] %v1140
    %1938 = vst [vmem:[%s7 + $0x88] sm:$0xff] %v1142
    %1939 = vst [vmem:[%s7 + $0x90] sm:$0xff] %v1355
    %1940 = vst [vmem:[%s7 + $0x98] sm:$0xff] %v1357
    %1941 = vst [vmem:[%s7 + $0xa0] sm:$0xff] %v1570
    %1942 = vst [vmem:[%s7 + $0xa8] sm:$0xff] %v1572
    %1943 = vst [vmem:[%s7 + $0xb0] sm:$0xff] %v1785
    %1944 = vst [vmem:[%s7 + $0xb8] sm:$0xff] %v1787
    %1945 = vst [vmem:[%s7 + $0xc0] sm:$0xff] %v1146
    %1946 = vst [vmem:[%s7 + $0xc8] sm:$0xff] %v1148
    %1947 = vst [vmem:[%s7 + $0xd0] sm:$0xff] %v1361
    %1948 = vst [vmem:[%s7 + $0xd8] sm:$0xff] %v1363
    %1949 = vst [vmem:[%s7 + $0xe0] sm:$0xff] %v1576
    %1950 = vst [vmem:[%s7 + $0xe8] sm:$0xff] %v1578
    %1951 = vst [vmem:[%s7 + $0xf0] sm:$0xff] %v1791
    %1952 = vst [vmem:[%s7 + $0xf8] sm:$0xff] %v1793
    %1953 = vst [vmem:[%s7 + $0x100] sm:$0xff] %v1152
    %1954 = vst [vmem:[%s7 + $0x108] sm:$0xff] %v1154
    %1955 = vst [vmem:[%s7 + $0x110] sm:$0xff] %v1367
    %1956 = vst [vmem:[%s7 + $0x118] sm:$0xff] %v1369
    %1957 = vst [vmem:[%s7 + $0x120] sm:$0xff] %v1582
    %1958 = vst [vmem:[%s7 + $0x128] sm:$0xff] %v1584
    %1959 = vst [vmem:[%s7 + $0x130] sm:$0xff] %v1797
    %1960 = vst [vmem:[%s7 + $0x138] sm:$0xff] %v1799
    %1961 = vst [vmem:[%s7 + $0x140] sm:$0xff] %v1158
    %1962 = vst [vmem:[%s7 + $0x148] sm:$0xff] %v1160
    %1963 = vst [vmem:[%s7 + $0x150] sm:$0xff] %v1373
    %1964 = vst [vmem:[%s7 + $0x158] sm:$0xff] %v1375
    %1965 = vst [vmem:[%s7 + $0x160] sm:$0xff] %v1588
    %1966 = vst [vmem:[%s7 + $0x168] sm:$0xff] %v1590
    %1967 = vst [vmem:[%s7 + $0x170] sm:$0xff] %v1803
    %1968 = vst [vmem:[%s7 + $0x178] sm:$0xff] %v1805
    %1969 = vst [vmem:[%s7 + $0x180] sm:$0xff] %v1164
    %1970 = vst [vmem:[%s7 + $0x188] sm:$0xff] %v1166
    %1971 = vst [vmem:[%s7 + $0x190] sm:$0xff] %v1379
    %1972 = vst [vmem:[%s7 + $0x198] sm:$0xff] %v1381
    %1973 = vst [vmem:[%s7 + $0x1a0] sm:$0xff] %v1594
    %1974 = vst [vmem:[%s7 + $0x1a8] sm:$0xff] %v1596
    %1975 = vst [vmem:[%s7 + $0x1b0] sm:$0xff] %v1809
    %1976 = vst [vmem:[%s7 + $0x1b8] sm:$0xff] %v1811
    %1977 = vst [vmem:[%s7 + $0x1c0] sm:$0xff] %v1170
    %1978 = vst [vmem:[%s7 + $0x1c8] sm:$0xff] %v1172
    %1979 = vst [vmem:[%s7 + $0x1d0] sm:$0xff] %v1385
    %1980 = vst [vmem:[%s7 + $0x1d8] sm:$0xff] %v1387
    %1981 = vst [vmem:[%s7 + $0x1e0] sm:$0xff] %v1600
    %1982 = vst [vmem:[%s7 + $0x1e8] sm:$0xff] %v1602
    %1983 = vst [vmem:[%s7 + $0x1f0] sm:$0xff] %v1815
    %1984 = vst [vmem:[%s7 + $0x1f8] sm:$0xff] %v1817
    %1985 = vst [vmem:[%s7 + $0x200] sm:$0xff] %v1176
    %1986 = vst [vmem:[%s7 + $0x208] sm:$0xff] %v1178
    %1987 = vst [vmem:[%s7 + $0x210] sm:$0xff] %v1391
    %1988 = vst [vmem:[%s7 + $0x218] sm:$0xff] %v1393
    %1989 = vst [vmem:[%s7 + $0x220] sm:$0xff] %v1606
    %1990 = vst [vmem:[%s7 + $0x228] sm:$0xff] %v1608
    %1991 = vst [vmem:[%s7 + $0x230] sm:$0xff] %v1821
    %1992 = vst [vmem:[%s7 + $0x238] sm:$0xff] %v1823
    %1993 = vst [vmem:[%s7 + $0x240] sm:$0xff] %v1182
    %1994 = vst [vmem:[%s7 + $0x248] sm:$0xff] %v1184
    %1995 = vst [vmem:[%s7 + $0x250] sm:$0xff] %v1397
    %1996 = vst [vmem:[%s7 + $0x258] sm:$0xff] %v1399
    %1997 = vst [vmem:[%s7 + $0x260] sm:$0xff] %v1612
    %1998 = vst [vmem:[%s7 + $0x268] sm:$0xff] %v1614
    %1999 = vst [vmem:[%s7 + $0x270] sm:$0xff] %v1827
    %2000 = vst [vmem:[%s7 + $0x278] sm:$0xff] %v1829
    %2001 = vst [vmem:[%s7 + $0x280] sm:$0xff] %v1188
    %2002 = vst [vmem:[%s7 + $0x288] sm:$0xff] %v1190
    %2003 = vst [vmem:[%s7 + $0x290] sm:$0xff] %v1403
    %2004 = vst [vmem:[%s7 + $0x298] sm:$0xff] %v1405
    %2005 = vst [vmem:[%s7 + $0x2a0] sm:$0xff] %v1618
    %2006 = vst [vmem:[%s7 + $0x2a8] sm:$0xff] %v1620
    %2007 = vst [vmem:[%s7 + $0x2b0] sm:$0xff] %v1833
    %2008 = vst [vmem:[%s7 + $0x2b8] sm:$0xff] %v1835
    %2009 = vst [vmem:[%s7 + $0x2c0] sm:$0xff] %v1194
    %2010 = vst [vmem:[%s7 + $0x2c8] sm:$0xff] %v1196
    %2011 = vst [vmem:[%s7 + $0x2d0] sm:$0xff] %v1409
    %2012 = vst [vmem:[%s7 + $0x2d8] sm:$0xff] %v1411
    %2013 = vst [vmem:[%s7 + $0x2e0] sm:$0xff] %v1624
    %2014 = vst [vmem:[%s7 + $0x2e8] sm:$0xff] %v1626
    %2015 = vst [vmem:[%s7 + $0x2f0] sm:$0xff] %v1839
    %2016 = vst [vmem:[%s7 + $0x2f8] sm:$0xff] %v1841
    %2017 = vst [vmem:[%s7 + $0x300] sm:$0xff] %v1200
    %2018 = vst [vmem:[%s7 + $0x308] sm:$0xff] %v1202
    %2019 = vst [vmem:[%s7 + $0x310] sm:$0xff] %v1415
    %2020 = vst [vmem:[%s7 + $0x318] sm:$0xff] %v1417
    %2021 = vst [vmem:[%s7 + $0x320] sm:$0xff] %v1630
    %2022 = vst [vmem:[%s7 + $0x328] sm:$0xff] %v1632
    %2023 = vst [vmem:[%s7 + $0x330] sm:$0xff] %v1845
    %2024 = vst [vmem:[%s7 + $0x338] sm:$0xff] %v1847
    %2025 = vst [vmem:[%s7 + $0x340] sm:$0xff] %v1206
    %2026 = vst [vmem:[%s7 + $0x348] sm:$0xff] %v1208
    %2027 = vst [vmem:[%s7 + $0x350] sm:$0xff] %v1421
    %2028 = vst [vmem:[%s7 + $0x358] sm:$0xff] %v1423
    %2029 = vst [vmem:[%s7 + $0x360] sm:$0xff] %v1636
    %2030 = vst [vmem:[%s7 + $0x368] sm:$0xff] %v1638
    %2031 = vst [vmem:[%s7 + $0x370] sm:$0xff] %v1851
    %2032 = vst [vmem:[%s7 + $0x378] sm:$0xff] %v1853
    %2033 = vst [vmem:[%s7 + $0x380] sm:$0xff] %v1212
    %2034 = vst [vmem:[%s7 + $0x388] sm:$0xff] %v1214
    %2035 = vst [vmem:[%s7 + $0x390] sm:$0xff] %v1427
    %2036 = vst [vmem:[%s7 + $0x398] sm:$0xff] %v1429
    %2037 = vst [vmem:[%s7 + $0x3a0] sm:$0xff] %v1642
    %2038 = vst [vmem:[%s7 + $0x3a8] sm:$0xff] %v1644
    %2039 = vst [vmem:[%s7 + $0x3b0] sm:$0xff] %v1857
    %2040 = vst [vmem:[%s7 + $0x3b8] sm:$0xff] %v1859
    %2041 = vst [vmem:[%s7 + $0x3c0] sm:$0xff] %v1218
    %2042 = vst [vmem:[%s7 + $0x3c8] sm:$0xff] %v1220
    %2043 = vst [vmem:[%s7 + $0x3d0] sm:$0xff] %v1433
    %2044 = vst [vmem:[%s7 + $0x3d8] sm:$0xff] %v1435
    %2045 = vst [vmem:[%s7 + $0x3e0] sm:$0xff] %v1648
    %2046 = vst [vmem:[%s7 + $0x3e8] sm:$0xff] %v1650
    %2047 = vst [vmem:[%s7 + $0x3f0] sm:$0xff] %v1863
    %2048 = vst [vmem:[%s7 + $0x3f8] sm:$0xff] %v1865
    %2049 = vst [vmem:[%s7 + $0x400] sm:$0xff] %v1224
    %2050 = vst [vmem:[%s7 + $0x408] sm:$0xff] %v1226
    %2051 = vst [vmem:[%s7 + $0x410] sm:$0xff] %v1439
    %2052 = vst [vmem:[%s7 + $0x418] sm:$0xff] %v1441
    %2053 = vst [vmem:[%s7 + $0x420] sm:$0xff] %v1654
    %2054 = vst [vmem:[%s7 + $0x428] sm:$0xff] %v1656
    %2055 = vst [vmem:[%s7 + $0x430] sm:$0xff] %v1869
    %2056 = vst [vmem:[%s7 + $0x438] sm:$0xff] %v1871
    %2057 = vst [vmem:[%s7 + $0x440] sm:$0xff] %v1230
    %2058 = vst [vmem:[%s7 + $0x448] sm:$0xff] %v1232
    %2059 = vst [vmem:[%s7 + $0x450] sm:$0xff] %v1445
    %2060 = vst [vmem:[%s7 + $0x458] sm:$0xff] %v1447
    %2061 = vst [vmem:[%s7 + $0x460] sm:$0xff] %v1660
    %2062 = vst [vmem:[%s7 + $0x468] sm:$0xff] %v1662
    %2063 = vst [vmem:[%s7 + $0x470] sm:$0xff] %v1875
    %2064 = vst [vmem:[%s7 + $0x478] sm:$0xff] %v1877
    %2065 = vst [vmem:[%s7 + $0x480] sm:$0xff] %v1236
    %2066 = vst [vmem:[%s7 + $0x488] sm:$0xff] %v1238
    %2067 = vst [vmem:[%s7 + $0x490] sm:$0xff] %v1451
    %2068 = vst [vmem:[%s7 + $0x498] sm:$0xff] %v1453
    %2069 = vst [vmem:[%s7 + $0x4a0] sm:$0xff] %v1666
    %2070 = vst [vmem:[%s7 + $0x4a8] sm:$0xff] %v1668
    %2071 = vst [vmem:[%s7 + $0x4b0] sm:$0xff] %v1881
    %2072 = vst [vmem:[%s7 + $0x4b8] sm:$0xff] %v1883
    %2073 = vst [vmem:[%s7 + $0x4c0] sm:$0xff] %v1242
    %2074 = vst [vmem:[%s7 + $0x4c8] sm:$0xff] %v1244
    %2075 = vst [vmem:[%s7 + $0x4d0] sm:$0xff] %v1457
    %2076 = vst [vmem:[%s7 + $0x4d8] sm:$0xff] %v1459
    %2077 = vst [vmem:[%s7 + $0x4e0] sm:$0xff] %v1672
    %2078 = vst [vmem:[%s7 + $0x4e8] sm:$0xff] %v1674
    %2079 = vst [vmem:[%s7 + $0x4f0] sm:$0xff] %v1887
    %2080 = vst [vmem:[%s7 + $0x4f8] sm:$0xff] %v1889
    %2081 = vst [vmem:[%s7 + $0x500] sm:$0xff] %v1248
    %2082 = vst [vmem:[%s7 + $0x508] sm:$0xff] %v1250
    %2083 = vst [vmem:[%s7 + $0x510] sm:$0xff] %v1463
    %2084 = vst [vmem:[%s7 + $0x518] sm:$0xff] %v1465
    %2085 = vst [vmem:[%s7 + $0x520] sm:$0xff] %v1678
    %2086 = vst [vmem:[%s7 + $0x528] sm:$0xff] %v1680
    %2087 = vst [vmem:[%s7 + $0x530] sm:$0xff] %v1893
    %2088 = vst [vmem:[%s7 + $0x538] sm:$0xff] %v1895
    %2089 = vst [vmem:[%s7 + $0x540] sm:$0xff] %v1254
    %2090 = vst [vmem:[%s7 + $0x548] sm:$0xff] %v1256
    %2091 = vst [vmem:[%s7 + $0x550] sm:$0xff] %v1469
    %2092 = vst [vmem:[%s7 + $0x558] sm:$0xff] %v1471
    %2093 = vst [vmem:[%s7 + $0x560] sm:$0xff] %v1684
    %2094 = vst [vmem:[%s7 + $0x568] sm:$0xff] %v1686
    %2095 = vst [vmem:[%s7 + $0x570] sm:$0xff] %v1899
    %2096 = vst [vmem:[%s7 + $0x578] sm:$0xff] %v1901
    %2097 = vst [vmem:[%s7 + $0x580] sm:$0xff] %v1260
    %2098 = vst [vmem:[%s7 + $0x588] sm:$0xff] %v1262
    %2099 = vst [vmem:[%s7 + $0x590] sm:$0xff] %v1475
    %2100 = vst [vmem:[%s7 + $0x598] sm:$0xff] %v1477
    %2101 = vst [vmem:[%s7 + $0x5a0] sm:$0xff] %v1690
    %2102 = vst [vmem:[%s7 + $0x5a8] sm:$0xff] %v1692
    %2103 = vst [vmem:[%s7 + $0x5b0] sm:$0xff] %v1905
    %2104 = vst [vmem:[%s7 + $0x5b8] sm:$0xff] %v1907
    %2105 = vst [vmem:[%s7 + $0x5c0] sm:$0xff] %v1266
    %2106 = vst [vmem:[%s7 + $0x5c8] sm:$0xff] %v1268
    %2107 = vst [vmem:[%s7 + $0x5d0] sm:$0xff] %v1481
    %2108 = vst [vmem:[%s7 + $0x5d8] sm:$0xff] %v1483
    %2109 = vst [vmem:[%s7 + $0x5e0] sm:$0xff] %v1696
    %2110 = vst [vmem:[%s7 + $0x5e8] sm:$0xff] %v1698
    %2111 = vst [vmem:[%s7 + $0x5f0] sm:$0xff] %v1911
    %2112 = vst [vmem:[%s7 + $0x5f8] sm:$0xff] %v1913
    %2113 = vst [vmem:[%s7 + $0x600] sm:$0xff] %v1272
    %2114 = vst [vmem:[%s7 + $0x608] sm:$0xff] %v1274
    %2115 = vst [vmem:[%s7 + $0x610] sm:$0xff] %v1487
    %2116 = vst [vmem:[%s7 + $0x618] sm:$0xff] %v1489
    %2117 = vst [vmem:[%s7 + $0x620] sm:$0xff] %v1702
    %2118 = vst [vmem:[%s7 + $0x628] sm:$0xff] %v1704
    %2119 = vst [vmem:[%s7 + $0x630] sm:$0xff] %v1917
    %2120 = vst [vmem:[%s7 + $0x638] sm:$0xff] %v1919
    // Predicated region
    $region34: #{shared_mlp.1} parent=1 // pred_check
      _
    $region35: #{shared_mlp.1} parent=1 // pred_check_branch
      %2122 = sbr.rel (0) target = $region37
    $region36: #{shared_mlp.1} parent=1 // pred_region
      _
    $region37: #{shared_mlp.1} parent=1 // pred_fallthru
      _
    // Predicated region
    $region38: #{shared_mlp.1} parent=1 // pred_check
      _
    $region39: #{shared_mlp.1} parent=1 // pred_check_branch
      %2124 = sbr.rel (0) target = $region41
    $region40: #{shared_mlp.1} parent=1 // pred_region
      _
    $region41: #{shared_mlp.1} parent=1 // pred_fallthru
      _
    %2125 = vsyncpa [#allocation3], 1

</llo_original>
